<compile_context>
chip_gen: v6e
topology: v6e:2x2x1
jax: 0.10.0
libtpu: 0.0.40
codegen_flags: <defaults>
</compile_context>

<pallas_src>
import jax
import jax.numpy as jnp
from jax.experimental import pallas as pl
from jax.experimental.pallas import tpu as pltpu

HIDDEN = (1024, 512, 512, 512)

# Row offsets of layers 2/3/4 inside the merged (2048, 512) int8 weight buffer.
_W234_ROWS = (0, 1024, 1536, 2048)

# Packed per-branch fp32 auxiliary row: biases, int8 scales, head row, head bias.
_AUX_LAYOUT = (("b1", 1024), ("b2", 512), ("b3", 512), ("b4", 512),
               ("s2", 512), ("s3", 512), ("s4", 512), ("w5", 512), ("b5", 1))
_AUX_SLICES = {}
_off = 0
for _name, _size in _AUX_LAYOUT:
    _AUX_SLICES[_name] = (_off, _size)
    _off += _size
_AUX_TOTAL = _off            # 4609; every field starts at a multiple of 128


def _critic_kernel(x_ref, w1_ref, w234_ref, aux_ref, o_ref):
    """One q-branch per grid step.  bf16 matmuls on the MXU, fp32 accumulation."""

    def aux(name):
        off, size = _AUX_SLICES[name]
        return aux_ref[:, off:off + size]          # (1, size) fp32, lane-aligned

    def lin_relu(h_bf16, w_bf16, bias, scale=None):
        y = jnp.dot(h_bf16, w_bf16, preferred_element_type=jnp.float32)
        if scale is not None:
            y = y * scale                          # per-output-channel dequant
        y = y + bias                               # (1, size) broadcasts over batch
        return jnp.maximum(y, 0.0)                 # ReLU on every layer (matches ref)

    # Layer 1: bf16 weights (tiny, smallest fan-in -> keep full bf16 precision).
    h = lin_relu(x_ref[...], w1_ref[...], aux("b1"))

    # Layers 2-4: int8 weights, dequantized on the VPU (int8 -> bf16 is exact).
    for li, (bname, sname) in enumerate((("b2", "s2"), ("b3", "s3"), ("b4", "s4"))):
        w_q = w234_ref[_W234_ROWS[li]:_W234_ROWS[li + 1], :]
        h = lin_relu(h.astype(jnp.bfloat16), w_q.astype(jnp.bfloat16),
                     aux(bname), aux(sname))

    # Final head (512 -> 1): VPU multiply + XLU lane reduction, fp32 end-to-end.
    q = jnp.sum(h * aux("w5"), axis=-1, keepdims=True)           # (batch, 1)
    q = q + aux("b5")
    o_ref[...] = jnp.maximum(q, 0.0).astype(o_ref.dtype)         # ReLU on output too


def _quantize_per_col(w):
    """Symmetric per-output-channel int8 quantization of an (in, out) matrix."""
    absmax = jnp.max(jnp.abs(w), axis=0)                         # (out,)
    scale = jnp.maximum(absmax, 1e-8) / 127.0
    w_q = jnp.clip(jnp.round(w / scale), -127.0, 127.0).astype(jnp.int8)
    return w_q, scale.astype(jnp.float32)


def pack_params(params_q1, params_q2):
    """Stack both branches along a leading axis of size 2.

    Returns:
      w1   : (2, in_dim, 1024) bf16
      w234 : (2, 2048, 512)    int8  (layers 2/3/4 row-concatenated)
      aux  : (2, 1, 4609)      fp32  (biases, int8 scales, head row, head bias)
    """
    def one_branch(params):
        w1 = params[0][0].astype(jnp.bfloat16)                   # (in, 1024)
        w2q, s2 = _quantize_per_col(params[1][0])
        w3q, s3 = _quantize_per_col(params[2][0])
        w4q, s4 = _quantize_per_col(params[3][0])
        w234 = jnp.concatenate([w2q, w3q, w4q], axis=0)          # (2048, 512) int8
        pieces = dict(
            b1=params[0][1], b2=params[1][1], b3=params[2][1], b4=params[3][1],
            s2=s2, s3=s3, s4=s4,
            w5=params[4][0].reshape(-1),                         # (512,)
            b5=params[4][1])                                     # (1,)
        aux = jnp.concatenate(
            [pieces[name].reshape(1, -1).astype(jnp.float32)
             for name, _ in _AUX_LAYOUT], axis=1)                # (1, 4609)
        return w1, w234, aux

    w1a, w234a, auxa = one_branch(params_q1)
    w1b, w234b, auxb = one_branch(params_q2)
    return (jnp.stack([w1a, w1b], axis=0),
            jnp.stack([w234a, w234b], axis=0),
            jnp.stack([auxa, auxb], axis=0))


def _branch_dim_semantics():
    """v7x has 2 TensorCores/chip: put one q-branch on each core.  Plain
    'parallel' elsewhere (single-TC v5e/v6e: the grid is just a 2-step loop)."""
    try:
        kind = jax.devices()[0].device_kind.lower()
    except Exception:                                            # pragma: no cover
        kind = ""
    if "v7" in kind or "7x" in kind:
        return (pltpu.CORE_PARALLEL,)
    return ("parallel",)


def critic_forward(s, a, p, w1, w234, aux):
    x = jnp.concatenate([s, a, p], axis=1).astype(jnp.bfloat16)
    batch, in_dim = x.shape

    flops = 2 * 2 * batch * (in_dim * HIDDEN[0] + HIDDEN[0] * HIDDEN[1]
                             + HIDDEN[1] * HIDDEN[2] + HIDDEN[2] * HIDDEN[3]
                             + HIDDEN[3] * 1)
    bytes_accessed = (x.size * 2 + w1.size * 2 + w234.size * 1
                      + aux.size * 4 + 2 * batch * 4)

    def wspec(d1, d2):
        # leading (branch) dim squeezed out of the kernel ref
        return pl.BlockSpec((None, d1, d2), lambda b: (b, 0, 0))

    out = pl.pallas_call(
        _critic_kernel,
        out_shape=jax.ShapeDtypeStruct((2, batch, 1), jnp.float32),
        grid=(2,),                                    # one grid step per q-branch
        in_specs=[
            pl.BlockSpec((batch, in_dim), lambda b: (0, 0)),   # x (shared, tiny)
            wspec(in_dim, HIDDEN[0]),                          # w1   bf16
            wspec(_W234_ROWS[-1], HIDDEN[1]),                  # w234 int8 (merged)
            wspec(1, _AUX_TOTAL),                              # aux  fp32 (packed)
        ],
        out_specs=pl.BlockSpec((None, batch, 1), lambda b: (b, 0, 0)),
        compiler_params=pltpu.CompilerParams(
            dimension_semantics=_branch_dim_semantics()),
        cost_estimate=pl.CostEstimate(flops=flops, transcendentals=0,
                                      bytes_accessed=bytes_accessed),
    )(x, w1, w234, aux)

    return out[0], out[1]


def init_branch(key, in_dim):
    """Kaiming-normal (fan_in, relu gain) weights, zero biases — PyTorch-like init."""
    params = []
    last = in_dim
    for out in list(HIDDEN) + [1]:
        key, sub = jax.random.split(key)
        std = (2.0 / last) ** 0.5
        w = std * jax.random.normal(sub, (last, out), dtype=jnp.float32)
        b = jnp.zeros((out,), dtype=jnp.float32)
        params.append((w, b))
        last = out
    return params, key


def _packed_reference(s, a, p, w1, w234, aux):
    """Plain-JAX mirror of the exact kernel math (bf16 matmul, int8 dequant)."""
    x = jnp.concatenate([s, a, p], axis=1).astype(jnp.bfloat16)

    def get(b, name):
        off, size = _AUX_SLICES[name]
        return aux[b, :, off:off + size]

    def branch(b):
        h = jnp.dot(x, w1[b], preferred_element_type=jnp.float32) + get(b, "b1")
        h = jnp.maximum(h, 0.0)
        for li, (bname, sname) in enumerate((("b2", "s2"), ("b3", "s3"), ("b4", "s4"))):
            w_q = w234[b, _W234_ROWS[li]:_W234_ROWS[li + 1], :]
            y = jnp.dot(h.astype(jnp.bfloat16), w_q.astype(jnp.bfloat16),
                        preferred_element_type=jnp.float32)
            h = jnp.maximum(y * get(b, sname) + get(b, bname), 0.0)
        q = jnp.sum(h * get(b, "w5"), axis=-1, keepdims=True) + get(b, "b5")
        return jnp.maximum(q, 0.0)

    return branch(0), branch(1)


def _fp32_reference(s, a, p, params_q1, params_q2):
    """Full-precision mirror of the PyTorch module's forward() (ReLU every layer)."""
    x = jnp.concatenate([s, a, p], axis=1)

    def branch(params):
        h = x
        for w, b in params:
            h = jnp.maximum(jnp.dot(h, w) + b, 0.0)
        return h

    return branch(params_q1), branch(params_q2)


if __name__ == "__main__":
    key = jax.random.PRNGKey(0)

    batch, state_dim, action_dim, param_dim = 8, 16, 4, 4
    in_dim = state_dim + action_dim + param_dim

    params_q1, key = init_branch(key, in_dim)
    params_q2, key = init_branch(key, in_dim)
    packed = pack_params(params_q1, params_q2)

    key, ks, ka, kp = jax.random.split(key, 4)
    s = jax.random.normal(ks, (batch, state_dim), dtype=jnp.float32)
    a = jax.random.normal(ka, (batch, action_dim), dtype=jnp.float32)
    p = jax.random.normal(kp, (batch, param_dim), dtype=jnp.float32)

    fwd = jax.jit(lambda s_, a_, p_: critic_forward(s_, a_, p_, *packed))
    q1, q2 = fwd(s, a, p)
    jax.block_until_ready((q1, q2))
    assert q1.shape == (batch, 1) and q2.shape == (batch, 1)

    # 1) Exact-math check: plain-JAX mirror of the same bf16/int8/fp32 recipe.
    r1, r2 = _packed_reference(s, a, p, *packed)
    assert jnp.allclose(q1, r1, atol=2e-2, rtol=2e-2)
    assert jnp.allclose(q2, r2, atol=2e-2, rtol=2e-2)

    # 2) fp32-parity check: int8 + bf16 error vs the full-precision
    #    PyTorch-equivalent forward must stay small relative to the Q scale.
    f1, f2 = _fp32_reference(s, a, p, params_q1, params_q2)
    for q, f in ((q1, f1), (q2, f2)):
        norm = float(jnp.max(jnp.abs(f))) + 1.0
        rel_err = float(jnp.max(jnp.abs(q - f))) / norm
        assert rel_err < 0.1, f"quantized forward deviates too much: {rel_err}"

    # NOTE: ReLU on the final layer (q >= 0) is intentional — it matches the
    # PyTorch reference forward(), even though it is unusual for a TD3 critic.
    print("KERNEL_OK")
</pallas_src>

<mosaic_0001>
module attributes {stable_mosaic.version = 11 : i64} {
  func.func @_critic_kernel(%arg0: i32, %arg1: memref<8x24xbf16, #tpu.memory_space<vmem>>, %arg2: memref<1x24x1024xbf16, #tpu.memory_space<vmem>>, %arg3: memref<1x2048x512xi8, #tpu.memory_space<vmem>>, %arg4: memref<1x1x4609xf32, #tpu.memory_space<vmem>>, %arg5: memref<1x8x1xf32, #tpu.memory_space<vmem>>) attributes {dimension_semantics = [#tpu.dimension_semantics<parallel>], iteration_bounds = array<i64: 2>, scalar_prefetch = 0 : i64, scratch_operands = 0 : i64, tpu.core_type = #tpu.core_type<tc>, window_params = [{pipeline_mode = #tpu.pipeline_mode<synchronous>, transform_indices = @transform_0, window_bounds = array<i64: 8, 24>}, {transform_indices = @transform_1, window_bounds = array<i64: 1, 24, 1024>}, {transform_indices = @transform_2, window_bounds = array<i64: 1, 2048, 512>}, {transform_indices = @transform_3, window_bounds = array<i64: 1, 1, 4609>}, {transform_indices = @transform_4, window_bounds = array<i64: 1, 8, 1>}]} {
    %c0 = arith.constant 0 : index
    %c0_0 = arith.constant 0 : index
    %0 = vector.load %arg1[%c0, %c0_0] : memref<8x24xbf16, #tpu.memory_space<vmem>>, vector<8x24xbf16>
    %c0_1 = arith.constant 0 : index
    %c0_2 = arith.constant 0 : index
    %c0_3 = arith.constant 0 : index
    %1 = vector.load %arg2[%c0_1, %c0_2, %c0_3] : memref<1x24x1024xbf16, #tpu.memory_space<vmem>>, vector<1x24x1024xbf16>
    %2 = vector.shape_cast %1 : vector<1x24x1024xbf16> to vector<24x1024xbf16>
    %c0_4 = arith.constant 0 : index
    %c0_5 = arith.constant 0 : index
    %c0_6 = arith.constant 0 : index
    %3 = vector.load %arg4[%c0_4, %c0_5, %c0_6] : memref<1x1x4609xf32, #tpu.memory_space<vmem>>, vector<1x1x1024xf32>
    %4 = vector.shape_cast %3 : vector<1x1x1024xf32> to vector<1x1024xf32>
    %cst = arith.constant dense<0.000000e+00> : vector<8x1024xf32>
    %5 = tpu.matmul %0, %2, %cst {dimension_numbers = #tpu.dot_dimension_numbers<[1], [0], [0], [1], [0, 0, 1, 1], [], []>} : vector<8x24xbf16>, vector<24x1024xbf16>, vector<8x1024xf32> -> vector<8x1024xf32>
    %6 = vector.broadcast %4 : vector<1x1024xf32> to vector<8x1024xf32>
    %7 = arith.addf %5, %6 : vector<8x1024xf32>
    %cst_7 = arith.constant 0.000000e+00 : f32
    %8 = vector.broadcast %cst_7 : f32 to vector<8x1024xf32>
    %9 = arith.maximumf %7, %8 : vector<8x1024xf32>
    %c0_8 = arith.constant 0 : index
    %c0_9 = arith.constant 0 : index
    %c0_10 = arith.constant 0 : index
    %10 = vector.load %arg3[%c0_8, %c0_9, %c0_10] : memref<1x2048x512xi8, #tpu.memory_space<vmem>>, vector<1x1024x512xi8>
    %11 = vector.shape_cast %10 : vector<1x1024x512xi8> to vector<1024x512xi8>
    %12 = arith.truncf %9 : vector<8x1024xf32> to vector<8x1024xbf16>
    %13 = arith.sitofp %11 : vector<1024x512xi8> to vector<1024x512xbf16>
    %c0_11 = arith.constant 0 : index
    %c0_12 = arith.constant 0 : index
    %c1024 = arith.constant 1024 : index
    %14 = vector.load %arg4[%c0_11, %c0_12, %c1024] : memref<1x1x4609xf32, #tpu.memory_space<vmem>>, vector<1x1x512xf32>
    %15 = vector.shape_cast %14 : vector<1x1x512xf32> to vector<1x512xf32>
    %c0_13 = arith.constant 0 : index
    %c0_14 = arith.constant 0 : index
    %c2560 = arith.constant 2560 : index
    %16 = vector.load %arg4[%c0_13, %c0_14, %c2560] : memref<1x1x4609xf32, #tpu.memory_space<vmem>>, vector<1x1x512xf32>
    %17 = vector.shape_cast %16 : vector<1x1x512xf32> to vector<1x512xf32>
    %cst_15 = arith.constant dense<0.000000e+00> : vector<8x512xf32>
    %18 = tpu.matmul %12, %13, %cst_15 {dimension_numbers = #tpu.dot_dimension_numbers<[1], [0], [0], [1], [0, 0, 1, 1], [], []>} : vector<8x1024xbf16>, vector<1024x512xbf16>, vector<8x512xf32> -> vector<8x512xf32>
    %19 = vector.broadcast %17 : vector<1x512xf32> to vector<8x512xf32>
    %20 = arith.mulf %18, %19 : vector<8x512xf32>
    %21 = vector.broadcast %15 : vector<1x512xf32> to vector<8x512xf32>
    %22 = arith.addf %20, %21 : vector<8x512xf32>
    %cst_16 = arith.constant 0.000000e+00 : f32
    %23 = vector.broadcast %cst_16 : f32 to vector<8x512xf32>
    %24 = arith.maximumf %22, %23 : vector<8x512xf32>
    %c0_17 = arith.constant 0 : index
    %c1024_18 = arith.constant 1024 : index
    %c0_19 = arith.constant 0 : index
    %25 = vector.load %arg3[%c0_17, %c1024_18, %c0_19] : memref<1x2048x512xi8, #tpu.memory_space<vmem>>, vector<1x512x512xi8>
    %26 = vector.shape_cast %25 : vector<1x512x512xi8> to vector<512x512xi8>
    %27 = arith.truncf %24 : vector<8x512xf32> to vector<8x512xbf16>
    %28 = arith.sitofp %26 : vector<512x512xi8> to vector<512x512xbf16>
    %c0_20 = arith.constant 0 : index
    %c0_21 = arith.constant 0 : index
    %c1536 = arith.constant 1536 : index
    %29 = vector.load %arg4[%c0_20, %c0_21, %c1536] : memref<1x1x4609xf32, #tpu.memory_space<vmem>>, vector<1x1x512xf32>
    %30 = vector.shape_cast %29 : vector<1x1x512xf32> to vector<1x512xf32>
    %c0_22 = arith.constant 0 : index
    %c0_23 = arith.constant 0 : index
    %c3072 = arith.constant 3072 : index
    %31 = vector.load %arg4[%c0_22, %c0_23, %c3072] : memref<1x1x4609xf32, #tpu.memory_space<vmem>>, vector<1x1x512xf32>
    %32 = vector.shape_cast %31 : vector<1x1x512xf32> to vector<1x512xf32>
    %cst_24 = arith.constant dense<0.000000e+00> : vector<8x512xf32>
    %33 = tpu.matmul %27, %28, %cst_24 {dimension_numbers = #tpu.dot_dimension_numbers<[1], [0], [0], [1], [0, 0, 1, 1], [], []>} : vector<8x512xbf16>, vector<512x512xbf16>, vector<8x512xf32> -> vector<8x512xf32>
    %34 = vector.broadcast %32 : vector<1x512xf32> to vector<8x512xf32>
    %35 = arith.mulf %33, %34 : vector<8x512xf32>
    %36 = vector.broadcast %30 : vector<1x512xf32> to vector<8x512xf32>
    %37 = arith.addf %35, %36 : vector<8x512xf32>
    %cst_25 = arith.constant 0.000000e+00 : f32
    %38 = vector.broadcast %cst_25 : f32 to vector<8x512xf32>
    %39 = arith.maximumf %37, %38 : vector<8x512xf32>
    %c0_26 = arith.constant 0 : index
    %c1536_27 = arith.constant 1536 : index
    %c0_28 = arith.constant 0 : index
    %40 = vector.load %arg3[%c0_26, %c1536_27, %c0_28] : memref<1x2048x512xi8, #tpu.memory_space<vmem>>, vector<1x512x512xi8>
    %41 = vector.shape_cast %40 : vector<1x512x512xi8> to vector<512x512xi8>
    %42 = arith.truncf %39 : vector<8x512xf32> to vector<8x512xbf16>
    %43 = arith.sitofp %41 : vector<512x512xi8> to vector<512x512xbf16>
    %c0_29 = arith.constant 0 : index
    %c0_30 = arith.constant 0 : index
    %c2048 = arith.constant 2048 : index
    %44 = vector.load %arg4[%c0_29, %c0_30, %c2048] : memref<1x1x4609xf32, #tpu.memory_space<vmem>>, vector<1x1x512xf32>
    %45 = vector.shape_cast %44 : vector<1x1x512xf32> to vector<1x512xf32>
    %c0_31 = arith.constant 0 : index
    %c0_32 = arith.constant 0 : index
    %c3584 = arith.constant 3584 : index
    %46 = vector.load %arg4[%c0_31, %c0_32, %c3584] : memref<1x1x4609xf32, #tpu.memory_space<vmem>>, vector<1x1x512xf32>
    %47 = vector.shape_cast %46 : vector<1x1x512xf32> to vector<1x512xf32>
    %cst_33 = arith.constant dense<0.000000e+00> : vector<8x512xf32>
    %48 = tpu.matmul %42, %43, %cst_33 {dimension_numbers = #tpu.dot_dimension_numbers<[1], [0], [0], [1], [0, 0, 1, 1], [], []>} : vector<8x512xbf16>, vector<512x512xbf16>, vector<8x512xf32> -> vector<8x512xf32>
    %49 = vector.broadcast %47 : vector<1x512xf32> to vector<8x512xf32>
    %50 = arith.mulf %48, %49 : vector<8x512xf32>
    %51 = vector.broadcast %45 : vector<1x512xf32> to vector<8x512xf32>
    %52 = arith.addf %50, %51 : vector<8x512xf32>
    %cst_34 = arith.constant 0.000000e+00 : f32
    %53 = vector.broadcast %cst_34 : f32 to vector<8x512xf32>
    %54 = arith.maximumf %52, %53 : vector<8x512xf32>
    %c0_35 = arith.constant 0 : index
    %c0_36 = arith.constant 0 : index
    %c4096 = arith.constant 4096 : index
    %55 = vector.load %arg4[%c0_35, %c0_36, %c4096] : memref<1x1x4609xf32, #tpu.memory_space<vmem>>, vector<1x1x512xf32>
    %56 = vector.shape_cast %55 : vector<1x1x512xf32> to vector<1x512xf32>
    %57 = vector.broadcast %56 : vector<1x512xf32> to vector<8x512xf32>
    %58 = arith.mulf %54, %57 : vector<8x512xf32>
    %cst_37 = arith.constant dense<0.000000e+00> : vector<8xf32>
    %59 = vector.multi_reduction <add>, %58, %cst_37 [1] : vector<8x512xf32> to vector<8xf32>
    %60 = vector.shape_cast %59 : vector<8xf32> to vector<8x1xf32>
    %c0_38 = arith.constant 0 : index
    %c0_39 = arith.constant 0 : index
    %c4608 = arith.constant 4608 : index
    %61 = vector.load %arg4[%c0_38, %c0_39, %c4608] : memref<1x1x4609xf32, #tpu.memory_space<vmem>>, vector<1x1x1xf32>
    %62 = vector.shape_cast %61 : vector<1x1x1xf32> to vector<1x1xf32>
    %63 = vector.broadcast %62 : vector<1x1xf32> to vector<8x1xf32>
    %64 = arith.addf %60, %63 : vector<8x1xf32>
    %cst_40 = arith.constant 0.000000e+00 : f32
    %65 = vector.broadcast %cst_40 : f32 to vector<8x1xf32>
    %66 = arith.maximumf %64, %65 : vector<8x1xf32>
    %c0_41 = arith.constant 0 : index
    %c0_42 = arith.constant 0 : index
    %c0_43 = arith.constant 0 : index
    %67 = vector.load %arg5[%c0_41, %c0_42, %c0_43] : memref<1x8x1xf32, #tpu.memory_space<vmem>>, vector<1x8x1xf32>
    %68 = vector.shape_cast %67 : vector<1x8x1xf32> to vector<8x1xf32>
    %69 = vector.shape_cast %66 : vector<8x1xf32> to vector<1x8x1xf32>
    tpu.vector_store %arg5[%c0_41, %c0_42, %c0_43], %69 {strides = array<i32>} : memref<1x8x1xf32, #tpu.memory_space<vmem>>, vector<1x8x1xf32>,
    return
  }
  func.func @transform_0(%arg0: i32) -> (i32, i32) {
    %c0_i32 = arith.constant 0 : i32
    %c0_i32_0 = arith.constant 0 : i32
    %c0_i32_1 = arith.constant 0 : i32
    return %c0_i32, %c0_i32_0 : i32, i32
  }
  func.func @transform_1(%arg0: i32) -> (i32, i32, i32) {
    %c0_i32 = arith.constant 0 : i32
    %c0_i32_0 = arith.constant 0 : i32
    %c0_i32_1 = arith.constant 0 : i32
    return %arg0, %c0_i32, %c0_i32_0 : i32, i32, i32
  }
  func.func @transform_2(%arg0: i32) -> (i32, i32, i32) {
    %c0_i32 = arith.constant 0 : i32
    %c0_i32_0 = arith.constant 0 : i32
    %c0_i32_1 = arith.constant 0 : i32
    return %arg0, %c0_i32, %c0_i32_0 : i32, i32, i32
  }
  func.func @transform_3(%arg0: i32) -> (i32, i32, i32) {
    %c0_i32 = arith.constant 0 : i32
    %c0_i32_0 = arith.constant 0 : i32
    %c0_i32_1 = arith.constant 0 : i32
    return %arg0, %c0_i32, %c0_i32_0 : i32, i32, i32
  }
  func.func @transform_4(%arg0: i32) -> (i32, i32, i32) {
    %c0_i32 = arith.constant 0 : i32
    %c0_i32_0 = arith.constant 0 : i32
    %c0_i32_1 = arith.constant 0 : i32
    return %arg0, %c0_i32, %c0_i32_0 : i32, i32, i32
  }
}

</mosaic_0001>

<llo_original>
// kernel: _lambda_.1
$region0: #{_lambda_.1}
  #allocation0 [shape = 'u32[]', space=smem, size = 0x4, offset = 0x4, fixed_abs, tag = 'smem constant byte address 0x4 - core index']
  #allocation1 [shape = 'u32[144,128]{1,0:T(1,128)}', space=vmem, size = 0x12000, scoped, tag = 'internal scratch']
  %s0 = inlined_call_operand.vmem [shape: bf16[8,24], index: 0, kind: input, shape index: {}]
  %s1 = inlined_call_operand.hbm [shape: bf16[2,24,1024], index: 1, kind: input, shape index: {}]
  %s2 = inlined_call_operand.hbm [shape: s8[2,2048,512], index: 2, kind: input, shape index: {}]
  %s3 = inlined_call_operand.hbm [shape: f32[2,1,4609], index: 3, kind: input, shape index: {}]
  %s4 = inlined_call_operand.vmem [shape: f32[2,8,1], index: 4, kind: output, shape index: {}]
  %s5 = sld [smem:[#allocation0]]
  $region61: #{_lambda_.1} parent=0
    _
  %s7 = ssub.s32 1, %s5
  %s8 = scalar_select 0, %s7, %s5
  $region1: #{_lambda_.1} parent=0
    #allocation2 [shape = 'u8[98304]{0}', space=vmem, size = 0x18000, scoped, tag = 'input window, operand 1']
    #allocation3 [shape = 's32[2]{0}', space=sflag, size = 0x8, scoped, tag = 'scoped memory for _lambda_.1']
    #allocation4 [shape = 'u8[2097152]{0}', space=vmem, size = 0x200000, scoped, tag = 'input window, operand 2']
    #allocation5 [shape = 's32[2]{0}', space=sflag, size = 0x8, scoped, tag = 'scoped memory for _lambda_.1']
    #allocation6 [shape = 'u8[37888]{0}', space=vmem, size = 0x9400, scoped, tag = 'input window, operand 3']
    %9 = vsyncpa [#allocation3], 0
    %s10 = scalar_lea.sflag [#allocation3], 1
    %11 = vsyncpa %s10, 0
    %12 = vsyncpa [#allocation5], 0
    %s13 = scalar_lea.sflag [#allocation5], 1
    %14 = vsyncpa %s13, 0
    loop: start=0, step=1, limit=4
    $region2: #{_lambda_.1} parent=1 // loop_pre_header
      _
    $region3: #{_lambda_.1} parent=1 // loop_header
      %s16 = sphi 0, %s20
      %p17 = scmp.ge.s32.totalorder %s16, 4
      %s24 = sphi 0, %s24
      %s26 = sphi 0, %s24
      %s27 = sphi 0, %s26
      %s41 = sphi 0, %s27
      %s47 = sphi 0, %s49
      %s50 = sphi 0, %s47
      %s51 = sphi 0, %s50
      %s67 = sphi 0, %s51
      %s73 = sphi 0, %s75
      %s76 = sphi 0, %s73
      %s77 = sphi 0, %s76
      %s93 = sphi 0, %s77
      %s99 = sphi 0, %s101
      %s102 = sphi 0, %s99
      %s103 = sphi 0, %s102
      %s119 = sphi 0, %s103
      %s125 = sphi 0, %s127
      %s128 = sphi 0, %s125
      %s129 = sphi 0, %s128
      %s145 = sphi 0, %s129
    $region4: #{_lambda_.1} parent=1 // loop_header_branch
      %19 = sbr.rel (%p17) target = $region8
    $region5: #{_lambda_.1} parent=1 // loop_body
      %s21 = ssub.s32 %s16, 1
      %s22 = ssub.s32 %s16, 2
      %s23 = sadd.s32 %s16, 1
      %s25 = sadd.s32 %s24, 1
      %p28 = scmp.eq.s32.totalorder %s16, 1
      %p29 = scmp.ne.s32.totalorder %s24, %s26
      %p30 = scmp.eq.s32.totalorder %s16, 0
      %p31 = por %p29, %p30
      %p32 = scmp.ne.s32.totalorder %s24, %s26
      %p33 = scmp.eq.s32.totalorder %s21, 1
      %p34 = por %p32, %p33
      %p35 = scmp.ne.s32.totalorder %s26, %s27
      %p36 = scmp.eq.s32.totalorder %s21, 0
      %p37 = por %p35, %p36
      %p38 = scmp.ne.s32.totalorder %s26, %s27
      %p39 = scmp.eq.s32.totalorder %s22, 1
      %p40 = por %p38, %p39
      %p42 = scmp.ne.s32.totalorder %s27, %s41
      %p43 = scmp.eq.s32.totalorder %s22, 0
      %p44 = por %p42, %p43
      %s45 = ssub.s32 %s16, %s23
      %p46 = scmp.eq.s32.totalorder %s45, 0
      %s48 = sadd.s32 %s47, 1
      %s49 = scalar_select %p46, %s47, %s48
      %p52 = pneg %p46
      %p53 = scmp.eq.s32.totalorder %s16, 1
      %p54 = por %p52, %p53
      %p55 = scmp.ne.s32.totalorder %s47, %s50
      %p56 = scmp.eq.s32.totalorder %s16, 0
      %p57 = por %p55, %p56
      %p58 = scmp.ne.s32.totalorder %s47, %s50
      %p59 = scmp.eq.s32.totalorder %s21, 1
      %p60 = por %p58, %p59
      %p61 = scmp.ne.s32.totalorder %s50, %s51
      %p62 = scmp.eq.s32.totalorder %s21, 0
      %p63 = por %p61, %p62
      %p64 = scmp.ne.s32.totalorder %s50, %s51
      %p65 = scmp.eq.s32.totalorder %s22, 1
      %p66 = por %p64, %p65
      %p68 = scmp.ne.s32.totalorder %s51, %s67
      %p69 = scmp.eq.s32.totalorder %s22, 0
      %p70 = por %p68, %p69
      %s71 = ssub.s32 %s16, %s23
      %p72 = scmp.eq.s32.totalorder %s71, 0
      %s74 = sadd.s32 %s73, 1
      %s75 = scalar_select %p72, %s73, %s74
      %p78 = pneg %p72
      %p79 = scmp.eq.s32.totalorder %s16, 1
      %p80 = por %p78, %p79
      %p81 = scmp.ne.s32.totalorder %s73, %s76
      %p82 = scmp.eq.s32.totalorder %s16, 0
      %p83 = por %p81, %p82
      %p84 = scmp.ne.s32.totalorder %s73, %s76
      %p85 = scmp.eq.s32.totalorder %s21, 1
      %p86 = por %p84, %p85
      %p87 = scmp.ne.s32.totalorder %s76, %s77
      %p88 = scmp.eq.s32.totalorder %s21, 0
      %p89 = por %p87, %p88
      %p90 = scmp.ne.s32.totalorder %s76, %s77
      %p91 = scmp.eq.s32.totalorder %s22, 1
      %p92 = por %p90, %p91
      %p94 = scmp.ne.s32.totalorder %s77, %s93
      %p95 = scmp.eq.s32.totalorder %s22, 0
      %p96 = por %p94, %p95
      %s97 = ssub.s32 %s16, %s23
      %p98 = scmp.eq.s32.totalorder %s97, 0
      %s100 = sadd.s32 %s99, 1
      %s101 = scalar_select %p98, %s99, %s100
      %p104 = pneg %p98
      %p105 = scmp.eq.s32.totalorder %s16, 1
      %p106 = por %p104, %p105
      %p107 = scmp.ne.s32.totalorder %s99, %s102
      %p108 = scmp.eq.s32.totalorder %s16, 0
      %p109 = por %p107, %p108
      %p110 = scmp.ne.s32.totalorder %s99, %s102
      %p111 = scmp.eq.s32.totalorder %s21, 1
      %p112 = por %p110, %p111
      %p113 = scmp.ne.s32.totalorder %s102, %s103
      %p114 = scmp.eq.s32.totalorder %s21, 0
      %p115 = por %p113, %p114
      %p116 = scmp.ne.s32.totalorder %s102, %s103
      %p117 = scmp.eq.s32.totalorder %s22, 1
      %p118 = por %p116, %p117
      %p120 = scmp.ne.s32.totalorder %s103, %s119
      %p121 = scmp.eq.s32.totalorder %s22, 0
      %p122 = por %p120, %p121
      %s123 = ssub.s32 %s16, %s23
      %p124 = scmp.eq.s32.totalorder %s123, 0
      %s126 = sadd.s32 %s125, 1
      %s127 = scalar_select %p124, %s125, %s126
      %p130 = pneg %p124
      %p131 = scmp.eq.s32.totalorder %s16, 1
      %p132 = por %p130, %p131
      %p133 = scmp.ne.s32.totalorder %s125, %s128
      %p134 = scmp.eq.s32.totalorder %s16, 0
      %p135 = por %p133, %p134
      %p136 = scmp.ne.s32.totalorder %s125, %s128
      %p137 = scmp.eq.s32.totalorder %s21, 1
      %p138 = por %p136, %p137
      %p139 = scmp.ne.s32.totalorder %s128, %s129
      %p140 = scmp.eq.s32.totalorder %s21, 0
      %p141 = por %p139, %p140
      %p142 = scmp.ne.s32.totalorder %s128, %s129
      %p143 = scmp.eq.s32.totalorder %s22, 1
      %p144 = por %p142, %p143
      %p146 = scmp.ne.s32.totalorder %s129, %s145
      %p147 = scmp.eq.s32.totalorder %s22, 0
      %p148 = por %p146, %p147
      %p149 = scmp.le.s32.totalorder 1, %s16
      %p150 = scmp.lt.s32.totalorder %s16, 3
      %p151 = pnand %p149, %p150
      %p152 = pneg %p151
      // Predicated region
      $region9: #{_lambda_.1} parent=5 // pred_check
        _
      $region10: #{_lambda_.1} parent=5 // pred_check_branch
        %154 = sbr.rel (%p151) target = $region12
      $region11: #{_lambda_.1} parent=5 // pred_region
        %s155 = ssub.s32 %s16, 1
        // Predicated region
        $region13: #{_lambda_.1} parent=11 // pred_check
          %p156 = pneg %p37
        $region14: #{_lambda_.1} parent=11 // pred_check_branch
          %158 = sbr.rel (%p156) target = $region16
        $region15: #{_lambda_.1} parent=11 // pred_region
          _
        $region16: #{_lambda_.1} parent=11 // pred_fallthru
          _
      $region12: #{_lambda_.1} parent=5 // pred_fallthru
        _
      %p159 = scmp.lt.s32.totalorder %s16, 2
      // Predicated region
      $region17: #{_lambda_.1} parent=5 // pred_check
        %p160 = pneg %p159
      $region18: #{_lambda_.1} parent=5 // pred_check_branch
        %162 = sbr.rel (%p160) target = $region20
      $region19: #{_lambda_.1} parent=5 // pred_region
        // Predicated region
        $region21: #{_lambda_.1} parent=19 // pred_check
          %p163 = pneg %p57
        $region22: #{_lambda_.1} parent=19 // pred_check_branch
          %165 = sbr.rel (%p163) target = $region24
        $region23: #{_lambda_.1} parent=19 // pred_region
          %s166 = sand.u32 %s47, 1
          %s167 = scalar_lea.sflag [#allocation3], %s166
          %s168 = sand.u32 %s47, 1
          %s169 = smul.addr %s168, 96
          %s170 = scalar_lea.vmem [#allocation2], %s169
          %s172 = ssub.s32 1536, 1536
          %173 = vsyncadd %s167, %s172
          %s174 = smul.addr %s16, 24
          %s175 = smul.addr %s174, 64
          %s176 = scalar_lea.hbm %s1, %s175
          %s177 = sshll.u32 %s170, 4
          %s178 = int_to_ptr.vmem [resolvable:$true] %s177
          %183 = dma.hbm_to_vmem [thread:$0]  %s176, 1536, %s178, %s167, 512, 512, 32
        $region24: #{_lambda_.1} parent=19 // pred_fallthru
          _
        // Predicated region
        $region25: #{_lambda_.1} parent=19 // pred_check
          %p184 = pneg %p83
        $region26: #{_lambda_.1} parent=19 // pred_check_branch
          %186 = sbr.rel (%p184) target = $region28
        $region27: #{_lambda_.1} parent=19 // pred_region
          %s187 = sand.u32 %s16, 1
          %s188 = scalar_lea.sflag [#allocation5], %s187
          %s189 = sand.u32 %s73, 1
          %s190 = smul.addr %s189, 2048
          %s191 = scalar_lea.vmem [#allocation4], %s190
          %s193 = ssub.s32 32768, 32768
          %194 = vsyncadd %s188, %s193
          %s195 = smul.addr %s16, 256
          %s196 = smul.addr %s195, 128
          %s197 = scalar_lea.hbm %s2, %s196
          %s198 = sshll.u32 %s191, 4
          %s199 = int_to_ptr.vmem [resolvable:$true] %s198
          %204 = dma.hbm_to_vmem [thread:$0]  %s197, 32768, %s199, %s188, 512, 512, 32
        $region28: #{_lambda_.1} parent=19 // pred_fallthru
          _
        // Predicated region
        $region29: #{_lambda_.1} parent=19 // pred_check
          %p205 = pneg %p109
        $region30: #{_lambda_.1} parent=19 // pred_check_branch
          %207 = sbr.rel (%p205) target = $region32
        $region31: #{_lambda_.1} parent=19 // pred_region
          %s208 = sand.u32 %s16, 1
          %s209 = scalar_lea.sflag [#allocation5], %s208
          %s210 = sand.u32 %s99, 1
          %s211 = smul.addr %s210, 37
          %s212 = scalar_lea.vmem [#allocation6], %s211
          %s214 = ssub.s32 592, 592
          %215 = vsyncadd %s209, %s214
          %s216 = smul.addr %s16, 37
          %s217 = smul.addr %s216, 16
          %s218 = scalar_lea.hbm %s3, %s217
          %s220 = sshll.u32 %s212, 4
          %s221 = int_to_ptr.vmem [resolvable:$true] %s220
          %223 = dma.hbm_to_vmem [thread:$0]  %s218, 592, %s221, %s209
        $region32: #{_lambda_.1} parent=19 // pred_fallthru
          _
      $region20: #{_lambda_.1} parent=5 // pred_fallthru
        _
      %p224 = scmp.le.s32.totalorder 1, %s16
      %p225 = scmp.lt.s32.totalorder %s16, 3
      %p226 = pnand %p224, %p225
      %p227 = pneg %p226
      // Predicated region
      $region33: #{_lambda_.1} parent=5 // pred_check
        _
      $region34: #{_lambda_.1} parent=5 // pred_check_branch
        %229 = sbr.rel (%p226) target = $region36
      $region35: #{_lambda_.1} parent=5 // pred_region
        %s230 = ssub.s32 %s16, 1
        %s231 = sand.u32 %s50, 1
        %s232 = scalar_lea.sflag [#allocation3], %s231
        %s233 = sand.u32 %s50, 1
        %s234 = smul.addr %s233, 96
        %s235 = scalar_lea.vmem [#allocation2], %s234
        // Predicated region
        $region37: #{_lambda_.1} parent=35 // pred_check
          %p236 = pneg %p63
        $region38: #{_lambda_.1} parent=35 // pred_check_branch
          %238 = sbr.rel (%p236) target = $region40
        $region39: #{_lambda_.1} parent=35 // pred_region
          %239 = dma.done %s232, 1536
        $region40: #{_lambda_.1} parent=35 // pred_fallthru
          _
        %s240 = sand.u32 %s21, 1
        %s241 = scalar_lea.sflag [#allocation5], %s240
        %s242 = sand.u32 %s76, 1
        %s243 = smul.addr %s242, 2048
        %s244 = scalar_lea.vmem [#allocation4], %s243
        // Predicated region
        $region41: #{_lambda_.1} parent=35 // pred_check
          %p245 = pneg %p89
        $region42: #{_lambda_.1} parent=35 // pred_check_branch
          %247 = sbr.rel (%p245) target = $region44
        $region43: #{_lambda_.1} parent=35 // pred_region
          %248 = dma.done %s241, 32768
        $region44: #{_lambda_.1} parent=35 // pred_fallthru
          _
        %s249 = sand.u32 %s21, 1
        %s250 = scalar_lea.sflag [#allocation5], %s249
        %s251 = sand.u32 %s102, 1
        %s252 = smul.addr %s251, 37
        %s253 = scalar_lea.vmem [#allocation6], %s252
        // Predicated region
        $region45: #{_lambda_.1} parent=35 // pred_check
          %p254 = pneg %p115
        $region46: #{_lambda_.1} parent=35 // pred_check_branch
          %256 = sbr.rel (%p254) target = $region48
        $region47: #{_lambda_.1} parent=35 // pred_region
          %257 = dma.done %s250, 592
        $region48: #{_lambda_.1} parent=35 // pred_fallthru
          _
        %p258 = pneg %p37
        %p259 = pneg %p34
        %s260 = sand.u32 %s50, 1
        %s261 = scalar_lea.sflag [#allocation3], %s260
        %s262 = sand.u32 %s50, 1
        %s263 = smul.addr %s262, 96
        %s264 = scalar_lea.vmem [#allocation2], %s263
        %p265 = pneg %p63
        %p266 = pneg %p60
        %s267 = sand.u32 %s21, 1
        %s268 = scalar_lea.sflag [#allocation5], %s267
        %s269 = sand.u32 %s76, 1
        %s270 = smul.addr %s269, 2048
        %s271 = scalar_lea.vmem [#allocation4], %s270
        %p272 = pneg %p89
        %p273 = pneg %p86
        %s274 = sand.u32 %s21, 1
        %s275 = scalar_lea.sflag [#allocation5], %s274
        %s276 = sand.u32 %s102, 1
        %s277 = smul.addr %s276, 37
        %s278 = scalar_lea.vmem [#allocation6], %s277
        %p279 = pneg %p115
        %p280 = pneg %p112
        %p281 = pneg %p141
        %p282 = pneg %p138
        %p283 = scmp.lt.s32.totalorder %s21, 1
        %s284 = scalar_select %p283, %s21, 1
        %s285 = smul.addr %s284, 8
        %s286 = scalar_lea.vmem %s4, %s285
        %p287 = scmp.lt.s32.totalorder %s21, 1
        %s288 = scalar_select %p287, %s21, 1
        %s289 = smul.addr %s288, 8
        %s290 = scalar_lea.vmem %s4, %s289
        %v292 = vld [vmem:[%s0] sm:$0xf]
        %v293 = vld [vmem:[%s235] sm:$0xff]
        %v294 = vld [vmem:[%s235 + $0x8] sm:$0xff]
        %v295 = vld [vmem:[%s235 + $0x10] sm:$0xff]
        %v296 = vld [vmem:[%s235 + $0x18] sm:$0xff]
        %v297 = vld [vmem:[%s235 + $0x20] sm:$0xff]
        %v298 = vld [vmem:[%s235 + $0x28] sm:$0xff]
        %v299 = vld [vmem:[%s235 + $0x30] sm:$0xff]
        %v300 = vld [vmem:[%s235 + $0x38] sm:$0xff]
        %v301 = vld [vmem:[%s235 + $0x40] sm:$0xff]
        %v302 = vld [vmem:[%s235 + $0x48] sm:$0xff]
        %v303 = vld [vmem:[%s235 + $0x50] sm:$0xff]
        %v304 = vld [vmem:[%s235 + $0x58] sm:$0xff]
        %v305 = vld [vmem:[%s253] sm:$0xff]
        %v307 = vlaneseq
        %v308 = vshrl.u32 %v307, 7
        %v309 = vsub.s32 0, %v308
        %v310 = vrot.slane %v305, %v309
        %v311 = vlaneseq
        %v312 = vshrl.u32 %v311, 7
        %v313 = vsub.s32 1, %v312
        %v314 = vrot.slane %v305, %v313
        %v315 = vlaneseq
        %v316 = vshrl.u32 %v315, 7
        %v317 = vsub.s32 2, %v316
        %v318 = vrot.slane %v305, %v317
        %v319 = vlaneseq
        %v320 = vshrl.u32 %v319, 7
        %v321 = vsub.s32 3, %v320
        %v322 = vrot.slane %v305, %v321
        %v323 = vlaneseq
        %v324 = vshrl.u32 %v323, 7
        %v325 = vsub.s32 4, %v324
        %v326 = vrot.slane %v305, %v325
        %v327 = vlaneseq
        %v328 = vshrl.u32 %v327, 7
        %v329 = vsub.s32 5, %v328
        %v330 = vrot.slane %v305, %v329
        %v331 = vlaneseq
        %v332 = vshrl.u32 %v331, 7
        %v333 = vsub.s32 6, %v332
        %v334 = vrot.slane %v305, %v333
        %v335 = vlaneseq
        %v336 = vshrl.u32 %v335, 7
        %v337 = vsub.s32 7, %v336
        %v338 = vrot.slane %v305, %v337
        %v359 = vunpack.c.l.b16 %v293
        %v360 = vunpack.c.h.b16 %v293
        %v361 = vunpack.c.l.b16 %v294
        %v362 = vunpack.c.h.b16 %v294
        %v363 = vunpack.c.l.b16 %v295
        %v364 = vunpack.c.h.b16 %v295
        %v365 = vunpack.c.l.b16 %v296
        %v366 = vunpack.c.h.b16 %v296
        %v367 = vunpack.c.l.b16 %v297
        %v368 = vunpack.c.h.b16 %v297
        %v369 = vunpack.c.l.b16 %v298
        %v370 = vunpack.c.h.b16 %v298
        %v371 = vunpack.c.l.b16 %v299
        %v372 = vunpack.c.h.b16 %v299
        %v373 = vunpack.c.l.b16 %v300
        %v374 = vunpack.c.h.b16 %v300
        %v375 = vunpack.c.l.b16 %v301
        %v376 = vunpack.c.h.b16 %v301
        %v377 = vunpack.c.l.b16 %v302
        %v378 = vunpack.c.h.b16 %v302
        %v379 = vunpack.c.l.b16 %v303
        %v380 = vunpack.c.h.b16 %v303
        %v381 = vunpack.c.l.b16 %v304
        %v382 = vunpack.c.h.b16 %v304
        %v383 = vpack.c.b16 %v367, %v359
        %v384 = vpack.c.b16 %v368, %v360
        %v385 = vpack.c.b16 %v369, %v361
        %v386 = vpack.c.b16 %v370, %v362
        %v387 = vpack.c.b16 %v371, %v363
        %v388 = vpack.c.b16 %v372, %v364
        %v389 = vpack.c.b16 %v373, %v365
        %v390 = vpack.c.b16 %v374, %v366
        %v391 = vpack.c.b16 %v375, %v375
        %v392 = vpack.c.b16 %v376, %v376
        %v393 = vpack.c.b16 %v377, %v377
        %v394 = vpack.c.b16 %v378, %v378
        %v395 = vpack.c.b16 %v379, %v379
        %v396 = vpack.c.b16 %v380, %v380
        %v397 = vpack.c.b16 %v381, %v381
        %v398 = vpack.c.b16 %v382, %v382
        %vm407 = vcmask 195584
        %v409 = vsel %vm407, %v292, 0
        %vm411 = vcmask 1043456
        %v413 = vsel %vm411, %v391, 0
        %v416 = vsel %vm411, %v392, 0
        %v419 = vsel %vm411, %v393, 0
        %v422 = vsel %vm411, %v394, 0
        %v425 = vsel %vm411, %v395, 0
        %v428 = vsel %vm411, %v396, 0
        %v431 = vsel %vm411, %v397, 0
        %v434 = vsel %vm411, %v398, 0
        %436 = vmatprep.subr.bf16.mxu0 0
        %437 = vmatpush1.bf16.msra.mxu0 0
        %438 = vmatprep.subr.bf16.mxu0 0
        %439 = vmatpush1.bf16.msra.mxu0 0
        %440 = vmatprep.subr.bf16.mxu0 0
        %441 = vmatpush1.bf16.msra.mxu0 0
        %442 = vmatprep.subr.bf16.mxu0 0
        %443 = vmatpush1.bf16.msra.mxu0 0
        %444 = vmatprep.subr.bf16.mxu0 0
        %445 = vmatpush1.bf16.msra.mxu0 0
        %446 = vmatprep.subr.bf16.mxu0 0
        %447 = vmatpush1.bf16.msra.mxu0 0
        %448 = vmatprep.subr.bf16.mxu0 %v416
        %449 = vmatpush1.bf16.msra.mxu0 %v413
        %450 = vmatprep.subr.bf16.mxu0 %v384
        %451 = vmatpush1.bf16.msra.mxu0 %v383
        %452 = vmatprep.subr.bf16.mxu0 0
        %453 = vmatpush2.bf16.msra.mxu0 0
        %454 = vmatprep.subr.bf16.mxu0 0
        %455 = vmatpush2.bf16.msra.mxu0 0
        %456 = vmatprep.subr.bf16.mxu0 0
        %457 = vmatpush2.bf16.msra.mxu0 0
        %458 = vmatprep.subr.bf16.mxu0 0
        %459 = vmatpush2.bf16.msra.mxu0 0
        %460 = vmatprep.subr.bf16.mxu0 0
        %461 = vmatpush2.bf16.msra.mxu0 0
        %462 = vmatprep.subr.bf16.mxu0 0
        %463 = vmatpush2.bf16.msra.mxu0 0
        %464 = vmatprep.subr.bf16.mxu0 0
        %465 = vmatpush2.bf16.msra.mxu0 0
        %466 = vmatprep.subr.bf16.mxu0 0
        %467 = vmatpush2.bf16.msra.mxu0 0
        %468 = vmatprep.mubr.bf16.mxu0 0
        %469 = vmatmul.mubr.bf16.gmra.mxu0 %v409
        %v470 = vpop.f32.mrf.mxu0
        %v471 = vadd.f32 %v310, %v470
        %v472 = vpop.f32.mrf.mxu0
        %v473 = vadd.f32 %v314, %v472
        %v474 = vpop.f32.mrf.mxu0
        %v475 = vpop.f32.mrf.mxu0
        %476 = vdwg.mxu0
        %477 = vmatprep.subr.bf16.mxu0 0
        %478 = vmatpush1.bf16.msra.mxu0 0
        %479 = vmatprep.subr.bf16.mxu0 0
        %480 = vmatpush1.bf16.msra.mxu0 0
        %481 = vmatprep.subr.bf16.mxu0 0
        %482 = vmatpush1.bf16.msra.mxu0 0
        %483 = vmatprep.subr.bf16.mxu0 0
        %484 = vmatpush1.bf16.msra.mxu0 0
        %485 = vmatprep.subr.bf16.mxu0 0
        %486 = vmatpush1.bf16.msra.mxu0 0
        %487 = vmatprep.subr.bf16.mxu0 0
        %488 = vmatpush1.bf16.msra.mxu0 0
        %489 = vmatprep.subr.bf16.mxu0 %v422
        %490 = vmatpush1.bf16.msra.mxu0 %v419
        %491 = vmatprep.subr.bf16.mxu0 %v386
        %492 = vmatpush1.bf16.msra.mxu0 %v385
        %493 = vmatprep.subr.bf16.mxu0 0
        %494 = vmatpush2.bf16.msra.mxu0 0
        %495 = vmatprep.subr.bf16.mxu0 0
        %496 = vmatpush2.bf16.msra.mxu0 0
        %497 = vmatprep.subr.bf16.mxu0 0
        %498 = vmatpush2.bf16.msra.mxu0 0
        %499 = vmatprep.subr.bf16.mxu0 0
        %500 = vmatpush2.bf16.msra.mxu0 0
        %501 = vmatprep.subr.bf16.mxu0 0
        %502 = vmatpush2.bf16.msra.mxu0 0
        %503 = vmatprep.subr.bf16.mxu0 0
        %504 = vmatpush2.bf16.msra.mxu0 0
        %505 = vmatprep.subr.bf16.mxu0 0
        %506 = vmatpush2.bf16.msra.mxu0 0
        %507 = vmatprep.subr.bf16.mxu0 0
        %508 = vmatpush2.bf16.msra.mxu0 0
        %509 = vmatprep.mubr.bf16.mxu0 0
        %510 = vmatmul.mubr.bf16.gmra.mxu0 %v409
        %v511 = vpop.f32.mrf.mxu0
        %v512 = vadd.f32 %v318, %v511
        %v513 = vpop.f32.mrf.mxu0
        %v514 = vadd.f32 %v322, %v513
        %v515 = vpop.f32.mrf.mxu0
        %v516 = vpop.f32.mrf.mxu0
        %517 = vdwg.mxu0
        %518 = vmatprep.subr.bf16.mxu0 0
        %519 = vmatpush1.bf16.msra.mxu0 0
        %520 = vmatprep.subr.bf16.mxu0 0
        %521 = vmatpush1.bf16.msra.mxu0 0
        %522 = vmatprep.subr.bf16.mxu0 0
        %523 = vmatpush1.bf16.msra.mxu0 0
        %524 = vmatprep.subr.bf16.mxu0 0
        %525 = vmatpush1.bf16.msra.mxu0 0
        %526 = vmatprep.subr.bf16.mxu0 0
        %527 = vmatpush1.bf16.msra.mxu0 0
        %528 = vmatprep.subr.bf16.mxu0 0
        %529 = vmatpush1.bf16.msra.mxu0 0
        %530 = vmatprep.subr.bf16.mxu0 %v428
        %531 = vmatpush1.bf16.msra.mxu0 %v425
        %532 = vmatprep.subr.bf16.mxu0 %v388
        %533 = vmatpush1.bf16.msra.mxu0 %v387
        %534 = vmatprep.subr.bf16.mxu0 0
        %535 = vmatpush2.bf16.msra.mxu0 0
        %536 = vmatprep.subr.bf16.mxu0 0
        %537 = vmatpush2.bf16.msra.mxu0 0
        %538 = vmatprep.subr.bf16.mxu0 0
        %539 = vmatpush2.bf16.msra.mxu0 0
        %540 = vmatprep.subr.bf16.mxu0 0
        %541 = vmatpush2.bf16.msra.mxu0 0
        %542 = vmatprep.subr.bf16.mxu0 0
        %543 = vmatpush2.bf16.msra.mxu0 0
        %544 = vmatprep.subr.bf16.mxu0 0
        %545 = vmatpush2.bf16.msra.mxu0 0
        %546 = vmatprep.subr.bf16.mxu0 0
        %547 = vmatpush2.bf16.msra.mxu0 0
        %548 = vmatprep.subr.bf16.mxu0 0
        %549 = vmatpush2.bf16.msra.mxu0 0
        %550 = vmatprep.mubr.bf16.mxu0 0
        %551 = vmatmul.mubr.bf16.gmra.mxu0 %v409
        %v552 = vpop.f32.mrf.mxu0
        %v553 = vadd.f32 %v326, %v552
        %v554 = vpop.f32.mrf.mxu0
        %v555 = vadd.f32 %v330, %v554
        %v556 = vpop.f32.mrf.mxu0
        %v557 = vpop.f32.mrf.mxu0
        %558 = vdwg.mxu0
        %559 = vmatprep.subr.bf16.mxu0 0
        %560 = vmatpush1.bf16.msra.mxu0 0
        %561 = vmatprep.subr.bf16.mxu0 0
        %562 = vmatpush1.bf16.msra.mxu0 0
        %563 = vmatprep.subr.bf16.mxu0 0
        %564 = vmatpush1.bf16.msra.mxu0 0
        %565 = vmatprep.subr.bf16.mxu0 0
        %566 = vmatpush1.bf16.msra.mxu0 0
        %567 = vmatprep.subr.bf16.mxu0 0
        %568 = vmatpush1.bf16.msra.mxu0 0
        %569 = vmatprep.subr.bf16.mxu0 0
        %570 = vmatpush1.bf16.msra.mxu0 0
        %571 = vmatprep.subr.bf16.mxu0 %v434
        %572 = vmatpush1.bf16.msra.mxu0 %v431
        %573 = vmatprep.subr.bf16.mxu0 %v390
        %574 = vmatpush1.bf16.msra.mxu0 %v389
        %575 = vmatprep.subr.bf16.mxu0 0
        %576 = vmatpush2.bf16.msra.mxu0 0
        %577 = vmatprep.subr.bf16.mxu0 0
        %578 = vmatpush2.bf16.msra.mxu0 0
        %579 = vmatprep.subr.bf16.mxu0 0
        %580 = vmatpush2.bf16.msra.mxu0 0
        %581 = vmatprep.subr.bf16.mxu0 0
        %582 = vmatpush2.bf16.msra.mxu0 0
        %583 = vmatprep.subr.bf16.mxu0 0
        %584 = vmatpush2.bf16.msra.mxu0 0
        %585 = vmatprep.subr.bf16.mxu0 0
        %586 = vmatpush2.bf16.msra.mxu0 0
        %587 = vmatprep.subr.bf16.mxu0 0
        %588 = vmatpush2.bf16.msra.mxu0 0
        %589 = vmatprep.subr.bf16.mxu0 0
        %590 = vmatpush2.bf16.msra.mxu0 0
        %591 = vmatprep.mubr.bf16.mxu0 0
        %592 = vmatmul.mubr.bf16.gmra.mxu0 %v409
        %v593 = vpop.f32.mrf.mxu0
        %v594 = vadd.f32 %v334, %v593
        %v595 = vpop.f32.mrf.mxu0
        %v596 = vadd.f32 %v338, %v595
        %v597 = vpop.f32.mrf.mxu0
        %v598 = vpop.f32.mrf.mxu0
        %599 = vdwg.mxu0
        %v600 = vmax.f32 %v471, 0.0
        %v601 = vmax.f32 %v473, 0.0
        %v602 = vmax.f32 %v512, 0.0
        %v603 = vmax.f32 %v514, 0.0
        %v604 = vmax.f32 %v553, 0.0
        %v605 = vmax.f32 %v555, 0.0
        %v606 = vmax.f32 %v594, 0.0
        %v607 = vmax.f32 %v596, 0.0
        %v608 = vld [vmem:[%s244] sm:$0xff]
        %v609 = vld [vmem:[%s244 + $0x8] sm:$0xff]
        %v610 = vld [vmem:[%s244 + $0x10] sm:$0xff]
        %v611 = vld [vmem:[%s244 + $0x18] sm:$0xff]
        %v612 = vld [vmem:[%s244 + $0x20] sm:$0xff]
        %v613 = vld [vmem:[%s244 + $0x28] sm:$0xff]
        %v614 = vld [vmem:[%s244 + $0x30] sm:$0xff]
        %v615 = vld [vmem:[%s244 + $0x38] sm:$0xff]
        %v616 = vld [vmem:[%s244 + $0x40] sm:$0xff]
        %v617 = vld [vmem:[%s244 + $0x48] sm:$0xff]
        %v618 = vld [vmem:[%s244 + $0x50] sm:$0xff]
        %v619 = vld [vmem:[%s244 + $0x58] sm:$0xff]
        %v620 = vld [vmem:[%s244 + $0x60] sm:$0xff]
        %v621 = vld [vmem:[%s244 + $0x68] sm:$0xff]
        %v622 = vld [vmem:[%s244 + $0x70] sm:$0xff]
        %v623 = vld [vmem:[%s244 + $0x78] sm:$0xff]
        %v624 = vld [vmem:[%s244 + $0x80] sm:$0xff]
        %v625 = vld [vmem:[%s244 + $0x88] sm:$0xff]
        %v626 = vld [vmem:[%s244 + $0x90] sm:$0xff]
        %v627 = vld [vmem:[%s244 + $0x98] sm:$0xff]
        %v628 = vld [vmem:[%s244 + $0xa0] sm:$0xff]
        %v629 = vld [vmem:[%s244 + $0xa8] sm:$0xff]
        %v630 = vld [vmem:[%s244 + $0xb0] sm:$0xff]
        %v631 = vld [vmem:[%s244 + $0xb8] sm:$0xff]
        %v632 = vld [vmem:[%s244 + $0xc0] sm:$0xff]
        %v633 = vld [vmem:[%s244 + $0xc8] sm:$0xff]
        %v634 = vld [vmem:[%s244 + $0xd0] sm:$0xff]
        %v635 = vld [vmem:[%s244 + $0xd8] sm:$0xff]
        %v636 = vld [vmem:[%s244 + $0xe0] sm:$0xff]
        %v637 = vld [vmem:[%s244 + $0xe8] sm:$0xff]
        %v638 = vld [vmem:[%s244 + $0xf0] sm:$0xff]
        %v639 = vld [vmem:[%s244 + $0xf8] sm:$0xff]
        %v640 = vld [vmem:[%s244 + $0x100] sm:$0xff]
        %v641 = vld [vmem:[%s244 + $0x108] sm:$0xff]
        %v642 = vld [vmem:[%s244 + $0x110] sm:$0xff]
        %v643 = vld [vmem:[%s244 + $0x118] sm:$0xff]
        %v644 = vld [vmem:[%s244 + $0x120] sm:$0xff]
        %v645 = vld [vmem:[%s244 + $0x128] sm:$0xff]
        %v646 = vld [vmem:[%s244 + $0x130] sm:$0xff]
        %v647 = vld [vmem:[%s244 + $0x138] sm:$0xff]
        %v648 = vld [vmem:[%s244 + $0x140] sm:$0xff]
        %v649 = vld [vmem:[%s244 + $0x148] sm:$0xff]
        %v650 = vld [vmem:[%s244 + $0x150] sm:$0xff]
        %v651 = vld [vmem:[%s244 + $0x158] sm:$0xff]
        %v652 = vld [vmem:[%s244 + $0x160] sm:$0xff]
        %v653 = vld [vmem:[%s244 + $0x168] sm:$0xff]
        %v654 = vld [vmem:[%s244 + $0x170] sm:$0xff]
        %v655 = vld [vmem:[%s244 + $0x178] sm:$0xff]
        %v656 = vld [vmem:[%s244 + $0x180] sm:$0xff]
        %v657 = vld [vmem:[%s244 + $0x188] sm:$0xff]
        %v658 = vld [vmem:[%s244 + $0x190] sm:$0xff]
        %v659 = vld [vmem:[%s244 + $0x198] sm:$0xff]
        %v660 = vld [vmem:[%s244 + $0x1a0] sm:$0xff]
        %v661 = vld [vmem:[%s244 + $0x1a8] sm:$0xff]
        %v662 = vld [vmem:[%s244 + $0x1b0] sm:$0xff]
        %v663 = vld [vmem:[%s244 + $0x1b8] sm:$0xff]
        %v664 = vld [vmem:[%s244 + $0x1c0] sm:$0xff]
        %v665 = vld [vmem:[%s244 + $0x1c8] sm:$0xff]
        %v666 = vld [vmem:[%s244 + $0x1d0] sm:$0xff]
        %v667 = vld [vmem:[%s244 + $0x1d8] sm:$0xff]
        %v668 = vld [vmem:[%s244 + $0x1e0] sm:$0xff]
        %v669 = vld [vmem:[%s244 + $0x1e8] sm:$0xff]
        %v670 = vld [vmem:[%s244 + $0x1f0] sm:$0xff]
        %v671 = vld [vmem:[%s244 + $0x1f8] sm:$0xff]
        %v672 = vld [vmem:[%s244 + $0x200] sm:$0xff]
        %v673 = vld [vmem:[%s244 + $0x208] sm:$0xff]
        %v674 = vld [vmem:[%s244 + $0x210] sm:$0xff]
        %v675 = vld [vmem:[%s244 + $0x218] sm:$0xff]
        %v676 = vld [vmem:[%s244 + $0x220] sm:$0xff]
        %v677 = vld [vmem:[%s244 + $0x228] sm:$0xff]
        %v678 = vld [vmem:[%s244 + $0x230] sm:$0xff]
        %v679 = vld [vmem:[%s244 + $0x238] sm:$0xff]
        %v680 = vld [vmem:[%s244 + $0x240] sm:$0xff]
        %v681 = vld [vmem:[%s244 + $0x248] sm:$0xff]
        %v682 = vld [vmem:[%s244 + $0x250] sm:$0xff]
        %v683 = vld [vmem:[%s244 + $0x258] sm:$0xff]
        %v684 = vld [vmem:[%s244 + $0x260] sm:$0xff]
        %v685 = vld [vmem:[%s244 + $0x268] sm:$0xff]
        %v686 = vld [vmem:[%s244 + $0x270] sm:$0xff]
        %v687 = vld [vmem:[%s244 + $0x278] sm:$0xff]
        %v688 = vld [vmem:[%s244 + $0x280] sm:$0xff]
        %v689 = vld [vmem:[%s244 + $0x288] sm:$0xff]
        %v690 = vld [vmem:[%s244 + $0x290] sm:$0xff]
        %v691 = vld [vmem:[%s244 + $0x298] sm:$0xff]
        %v692 = vld [vmem:[%s244 + $0x2a0] sm:$0xff]
        %v693 = vld [vmem:[%s244 + $0x2a8] sm:$0xff]
        %v694 = vld [vmem:[%s244 + $0x2b0] sm:$0xff]
        %v695 = vld [vmem:[%s244 + $0x2b8] sm:$0xff]
        %v696 = vld [vmem:[%s244 + $0x2c0] sm:$0xff]
        %v697 = vld [vmem:[%s244 + $0x2c8] sm:$0xff]
        %v698 = vld [vmem:[%s244 + $0x2d0] sm:$0xff]
        %v699 = vld [vmem:[%s244 + $0x2d8] sm:$0xff]
        %v700 = vld [vmem:[%s244 + $0x2e0] sm:$0xff]
        %v701 = vld [vmem:[%s244 + $0x2e8] sm:$0xff]
        %v702 = vld [vmem:[%s244 + $0x2f0] sm:$0xff]
        %v703 = vld [vmem:[%s244 + $0x2f8] sm:$0xff]
        %v704 = vld [vmem:[%s244 + $0x300] sm:$0xff]
        %v705 = vld [vmem:[%s244 + $0x308] sm:$0xff]
        %v706 = vld [vmem:[%s244 + $0x310] sm:$0xff]
        %v707 = vld [vmem:[%s244 + $0x318] sm:$0xff]
        %v708 = vld [vmem:[%s244 + $0x320] sm:$0xff]
        %v709 = vld [vmem:[%s244 + $0x328] sm:$0xff]
        %v710 = vld [vmem:[%s244 + $0x330] sm:$0xff]
        %v711 = vld [vmem:[%s244 + $0x338] sm:$0xff]
        %v712 = vld [vmem:[%s244 + $0x340] sm:$0xff]
        %v713 = vld [vmem:[%s244 + $0x348] sm:$0xff]
        %v714 = vld [vmem:[%s244 + $0x350] sm:$0xff]
        %v715 = vld [vmem:[%s244 + $0x358] sm:$0xff]
        %v716 = vld [vmem:[%s244 + $0x360] sm:$0xff]
        %v717 = vld [vmem:[%s244 + $0x368] sm:$0xff]
        %v718 = vld [vmem:[%s244 + $0x370] sm:$0xff]
        %v719 = vld [vmem:[%s244 + $0x378] sm:$0xff]
        %v720 = vld [vmem:[%s244 + $0x380] sm:$0xff]
        %v721 = vld [vmem:[%s244 + $0x388] sm:$0xff]
        %v722 = vld [vmem:[%s244 + $0x390] sm:$0xff]
        %v723 = vld [vmem:[%s244 + $0x398] sm:$0xff]
        %v724 = vld [vmem:[%s244 + $0x3a0] sm:$0xff]
        %v725 = vld [vmem:[%s244 + $0x3a8] sm:$0xff]
        %v726 = vld [vmem:[%s244 + $0x3b0] sm:$0xff]
        %v727 = vld [vmem:[%s244 + $0x3b8] sm:$0xff]
        %v728 = vld [vmem:[%s244 + $0x3c0] sm:$0xff]
        %v729 = vld [vmem:[%s244 + $0x3c8] sm:$0xff]
        %v730 = vld [vmem:[%s244 + $0x3d0] sm:$0xff]
        %v731 = vld [vmem:[%s244 + $0x3d8] sm:$0xff]
        %v732 = vld [vmem:[%s244 + $0x3e0] sm:$0xff]
        %v733 = vld [vmem:[%s244 + $0x3e8] sm:$0xff]
        %v734 = vld [vmem:[%s244 + $0x3f0] sm:$0xff]
        %v735 = vld [vmem:[%s244 + $0x3f8] sm:$0xff]
        %v736 = vpack.c.bf16 %v600, %v600
        %v737 = vpack.c.bf16 %v601, %v601
        %v738 = vpack.c.bf16 %v602, %v602
        %v739 = vpack.c.bf16 %v603, %v603
        %v740 = vpack.c.bf16 %v604, %v604
        %v741 = vpack.c.bf16 %v605, %v605
        %v742 = vpack.c.bf16 %v606, %v606
        %v743 = vpack.c.bf16 %v607, %v607
        %v744 = vunpack.c.l.s8.bf16 %v608
        %v745 = vunpack.c.l.s8.bf16 %v609
        %v746 = vunpack.c.l.s8.bf16 %v610
        %v747 = vunpack.c.l.s8.bf16 %v611
        %v748 = vunpack.c.h.s8.bf16 %v608
        %v749 = vunpack.c.h.s8.bf16 %v609
        %v750 = vunpack.c.h.s8.bf16 %v610
        %v751 = vunpack.c.h.s8.bf16 %v611
        %v752 = vunpack.c.l.s8.bf16 %v612
        %v753 = vunpack.c.l.s8.bf16 %v613
        %v754 = vunpack.c.l.s8.bf16 %v614
        %v755 = vunpack.c.l.s8.bf16 %v615
        %v756 = vunpack.c.h.s8.bf16 %v612
        %v757 = vunpack.c.h.s8.bf16 %v613
        %v758 = vunpack.c.h.s8.bf16 %v614
        %v759 = vunpack.c.h.s8.bf16 %v615
        %v760 = vunpack.c.l.s8.bf16 %v616
        %v761 = vunpack.c.l.s8.bf16 %v617
        %v762 = vunpack.c.l.s8.bf16 %v618
        %v763 = vunpack.c.l.s8.bf16 %v619
        %v764 = vunpack.c.h.s8.bf16 %v616
        %v765 = vunpack.c.h.s8.bf16 %v617
        %v766 = vunpack.c.h.s8.bf16 %v618
        %v767 = vunpack.c.h.s8.bf16 %v619
        %v768 = vunpack.c.l.s8.bf16 %v620
        %v769 = vunpack.c.l.s8.bf16 %v621
        %v770 = vunpack.c.l.s8.bf16 %v622
        %v771 = vunpack.c.l.s8.bf16 %v623
        %v772 = vunpack.c.h.s8.bf16 %v620
        %v773 = vunpack.c.h.s8.bf16 %v621
        %v774 = vunpack.c.h.s8.bf16 %v622
        %v775 = vunpack.c.h.s8.bf16 %v623
        %v776 = vunpack.c.l.s8.bf16 %v624
        %v777 = vunpack.c.l.s8.bf16 %v625
        %v778 = vunpack.c.l.s8.bf16 %v626
        %v779 = vunpack.c.l.s8.bf16 %v627
        %v780 = vunpack.c.h.s8.bf16 %v624
        %v781 = vunpack.c.h.s8.bf16 %v625
        %v782 = vunpack.c.h.s8.bf16 %v626
        %v783 = vunpack.c.h.s8.bf16 %v627
        %v784 = vunpack.c.l.s8.bf16 %v628
        %v785 = vunpack.c.l.s8.bf16 %v629
        %v786 = vunpack.c.l.s8.bf16 %v630
        %v787 = vunpack.c.l.s8.bf16 %v631
        %v788 = vunpack.c.h.s8.bf16 %v628
        %v789 = vunpack.c.h.s8.bf16 %v629
        %v790 = vunpack.c.h.s8.bf16 %v630
        %v791 = vunpack.c.h.s8.bf16 %v631
        %v792 = vunpack.c.l.s8.bf16 %v632
        %v793 = vunpack.c.l.s8.bf16 %v633
        %v794 = vunpack.c.l.s8.bf16 %v634
        %v795 = vunpack.c.l.s8.bf16 %v635
        %v796 = vunpack.c.h.s8.bf16 %v632
        %v797 = vunpack.c.h.s8.bf16 %v633
        %v798 = vunpack.c.h.s8.bf16 %v634
        %v799 = vunpack.c.h.s8.bf16 %v635
        %v800 = vunpack.c.l.s8.bf16 %v636
        %v801 = vunpack.c.l.s8.bf16 %v637
        %v802 = vunpack.c.l.s8.bf16 %v638
        %v803 = vunpack.c.l.s8.bf16 %v639
        %v804 = vunpack.c.h.s8.bf16 %v636
        %v805 = vunpack.c.h.s8.bf16 %v637
        %v806 = vunpack.c.h.s8.bf16 %v638
        %v807 = vunpack.c.h.s8.bf16 %v639
        %v808 = vunpack.c.l.s8.bf16 %v640
        %v809 = vunpack.c.l.s8.bf16 %v641
        %v810 = vunpack.c.l.s8.bf16 %v642
        %v811 = vunpack.c.l.s8.bf16 %v643
        %v812 = vunpack.c.h.s8.bf16 %v640
        %v813 = vunpack.c.h.s8.bf16 %v641
        %v814 = vunpack.c.h.s8.bf16 %v642
        %v815 = vunpack.c.h.s8.bf16 %v643
        %v816 = vunpack.c.l.s8.bf16 %v644
        %v817 = vunpack.c.l.s8.bf16 %v645
        %v818 = vunpack.c.l.s8.bf16 %v646
        %v819 = vunpack.c.l.s8.bf16 %v647
        %v820 = vunpack.c.h.s8.bf16 %v644
        %v821 = vunpack.c.h.s8.bf16 %v645
        %v822 = vunpack.c.h.s8.bf16 %v646
        %v823 = vunpack.c.h.s8.bf16 %v647
        %v824 = vunpack.c.l.s8.bf16 %v648
        %v825 = vunpack.c.l.s8.bf16 %v649
        %v826 = vunpack.c.l.s8.bf16 %v650
        %v827 = vunpack.c.l.s8.bf16 %v651
        %v828 = vunpack.c.h.s8.bf16 %v648
        %v829 = vunpack.c.h.s8.bf16 %v649
        %v830 = vunpack.c.h.s8.bf16 %v650
        %v831 = vunpack.c.h.s8.bf16 %v651
        %v832 = vunpack.c.l.s8.bf16 %v652
        %v833 = vunpack.c.l.s8.bf16 %v653
        %v834 = vunpack.c.l.s8.bf16 %v654
        %v835 = vunpack.c.l.s8.bf16 %v655
        %v836 = vunpack.c.h.s8.bf16 %v652
        %v837 = vunpack.c.h.s8.bf16 %v653
        %v838 = vunpack.c.h.s8.bf16 %v654
        %v839 = vunpack.c.h.s8.bf16 %v655
        %v840 = vunpack.c.l.s8.bf16 %v656
        %v841 = vunpack.c.l.s8.bf16 %v657
        %v842 = vunpack.c.l.s8.bf16 %v658
        %v843 = vunpack.c.l.s8.bf16 %v659
        %v844 = vunpack.c.h.s8.bf16 %v656
        %v845 = vunpack.c.h.s8.bf16 %v657
        %v846 = vunpack.c.h.s8.bf16 %v658
        %v847 = vunpack.c.h.s8.bf16 %v659
        %v848 = vunpack.c.l.s8.bf16 %v660
        %v849 = vunpack.c.l.s8.bf16 %v661
        %v850 = vunpack.c.l.s8.bf16 %v662
        %v851 = vunpack.c.l.s8.bf16 %v663
        %v852 = vunpack.c.h.s8.bf16 %v660
        %v853 = vunpack.c.h.s8.bf16 %v661
        %v854 = vunpack.c.h.s8.bf16 %v662
        %v855 = vunpack.c.h.s8.bf16 %v663
        %v856 = vunpack.c.l.s8.bf16 %v664
        %v857 = vunpack.c.l.s8.bf16 %v665
        %v858 = vunpack.c.l.s8.bf16 %v666
        %v859 = vunpack.c.l.s8.bf16 %v667
        %v860 = vunpack.c.h.s8.bf16 %v664
        %v861 = vunpack.c.h.s8.bf16 %v665
        %v862 = vunpack.c.h.s8.bf16 %v666
        %v863 = vunpack.c.h.s8.bf16 %v667
        %v864 = vunpack.c.l.s8.bf16 %v668
        %v865 = vunpack.c.l.s8.bf16 %v669
        %v866 = vunpack.c.l.s8.bf16 %v670
        %v867 = vunpack.c.l.s8.bf16 %v671
        %v868 = vunpack.c.h.s8.bf16 %v668
        %v869 = vunpack.c.h.s8.bf16 %v669
        %v870 = vunpack.c.h.s8.bf16 %v670
        %v871 = vunpack.c.h.s8.bf16 %v671
        %v872 = vunpack.c.l.s8.bf16 %v672
        %v873 = vunpack.c.l.s8.bf16 %v673
        %v874 = vunpack.c.l.s8.bf16 %v674
        %v875 = vunpack.c.l.s8.bf16 %v675
        %v876 = vunpack.c.h.s8.bf16 %v672
        %v877 = vunpack.c.h.s8.bf16 %v673
        %v878 = vunpack.c.h.s8.bf16 %v674
        %v879 = vunpack.c.h.s8.bf16 %v675
        %v880 = vunpack.c.l.s8.bf16 %v676
        %v881 = vunpack.c.l.s8.bf16 %v677
        %v882 = vunpack.c.l.s8.bf16 %v678
        %v883 = vunpack.c.l.s8.bf16 %v679
        %v884 = vunpack.c.h.s8.bf16 %v676
        %v885 = vunpack.c.h.s8.bf16 %v677
        %v886 = vunpack.c.h.s8.bf16 %v678
        %v887 = vunpack.c.h.s8.bf16 %v679
        %v888 = vunpack.c.l.s8.bf16 %v680
        %v889 = vunpack.c.l.s8.bf16 %v681
        %v890 = vunpack.c.l.s8.bf16 %v682
        %v891 = vunpack.c.l.s8.bf16 %v683
        %v892 = vunpack.c.h.s8.bf16 %v680
        %v893 = vunpack.c.h.s8.bf16 %v681
        %v894 = vunpack.c.h.s8.bf16 %v682
        %v895 = vunpack.c.h.s8.bf16 %v683
        %v896 = vunpack.c.l.s8.bf16 %v684
        %v897 = vunpack.c.l.s8.bf16 %v685
        %v898 = vunpack.c.l.s8.bf16 %v686
        %v899 = vunpack.c.l.s8.bf16 %v687
        %v900 = vunpack.c.h.s8.bf16 %v684
        %v901 = vunpack.c.h.s8.bf16 %v685
        %v902 = vunpack.c.h.s8.bf16 %v686
        %v903 = vunpack.c.h.s8.bf16 %v687
        %v904 = vunpack.c.l.s8.bf16 %v688
        %v905 = vunpack.c.l.s8.bf16 %v689
        %v906 = vunpack.c.l.s8.bf16 %v690
        %v907 = vunpack.c.l.s8.bf16 %v691
        %v908 = vunpack.c.h.s8.bf16 %v688
        %v909 = vunpack.c.h.s8.bf16 %v689
        %v910 = vunpack.c.h.s8.bf16 %v690
        %v911 = vunpack.c.h.s8.bf16 %v691
        %v912 = vunpack.c.l.s8.bf16 %v692
        %v913 = vunpack.c.l.s8.bf16 %v693
        %v914 = vunpack.c.l.s8.bf16 %v694
        %v915 = vunpack.c.l.s8.bf16 %v695
        %v916 = vunpack.c.h.s8.bf16 %v692
        %v917 = vunpack.c.h.s8.bf16 %v693
        %v918 = vunpack.c.h.s8.bf16 %v694
        %v919 = vunpack.c.h.s8.bf16 %v695
        %v920 = vunpack.c.l.s8.bf16 %v696
        %v921 = vunpack.c.l.s8.bf16 %v697
        %v922 = vunpack.c.l.s8.bf16 %v698
        %v923 = vunpack.c.l.s8.bf16 %v699
        %v924 = vunpack.c.h.s8.bf16 %v696
        %v925 = vunpack.c.h.s8.bf16 %v697
        %v926 = vunpack.c.h.s8.bf16 %v698
        %v927 = vunpack.c.h.s8.bf16 %v699
        %v928 = vunpack.c.l.s8.bf16 %v700
        %v929 = vunpack.c.l.s8.bf16 %v701
        %v930 = vunpack.c.l.s8.bf16 %v702
        %v931 = vunpack.c.l.s8.bf16 %v703
        %v932 = vunpack.c.h.s8.bf16 %v700
        %v933 = vunpack.c.h.s8.bf16 %v701
        %v934 = vunpack.c.h.s8.bf16 %v702
        %v935 = vunpack.c.h.s8.bf16 %v703
        %v936 = vunpack.c.l.s8.bf16 %v704
        %v937 = vunpack.c.l.s8.bf16 %v705
        %v938 = vunpack.c.l.s8.bf16 %v706
        %v939 = vunpack.c.l.s8.bf16 %v707
        %v940 = vunpack.c.h.s8.bf16 %v704
        %v941 = vunpack.c.h.s8.bf16 %v705
        %v942 = vunpack.c.h.s8.bf16 %v706
        %v943 = vunpack.c.h.s8.bf16 %v707
        %v944 = vunpack.c.l.s8.bf16 %v708
        %v945 = vunpack.c.l.s8.bf16 %v709
        %v946 = vunpack.c.l.s8.bf16 %v710
        %v947 = vunpack.c.l.s8.bf16 %v711
        %v948 = vunpack.c.h.s8.bf16 %v708
        %v949 = vunpack.c.h.s8.bf16 %v709
        %v950 = vunpack.c.h.s8.bf16 %v710
        %v951 = vunpack.c.h.s8.bf16 %v711
        %v952 = vunpack.c.l.s8.bf16 %v712
        %v953 = vunpack.c.l.s8.bf16 %v713
        %v954 = vunpack.c.l.s8.bf16 %v714
        %v955 = vunpack.c.l.s8.bf16 %v715
        %v956 = vunpack.c.h.s8.bf16 %v712
        %v957 = vunpack.c.h.s8.bf16 %v713
        %v958 = vunpack.c.h.s8.bf16 %v714
        %v959 = vunpack.c.h.s8.bf16 %v715
        %v960 = vunpack.c.l.s8.bf16 %v716
        %v961 = vunpack.c.l.s8.bf16 %v717
        %v962 = vunpack.c.l.s8.bf16 %v718
        %v963 = vunpack.c.l.s8.bf16 %v719
        %v964 = vunpack.c.h.s8.bf16 %v716
        %v965 = vunpack.c.h.s8.bf16 %v717
        %v966 = vunpack.c.h.s8.bf16 %v718
        %v967 = vunpack.c.h.s8.bf16 %v719
        %v968 = vunpack.c.l.s8.bf16 %v720
        %v969 = vunpack.c.l.s8.bf16 %v721
        %v970 = vunpack.c.l.s8.bf16 %v722
        %v971 = vunpack.c.l.s8.bf16 %v723
        %v972 = vunpack.c.h.s8.bf16 %v720
        %v973 = vunpack.c.h.s8.bf16 %v721
        %v974 = vunpack.c.h.s8.bf16 %v722
        %v975 = vunpack.c.h.s8.bf16 %v723
        %v976 = vunpack.c.l.s8.bf16 %v724
        %v977 = vunpack.c.l.s8.bf16 %v725
        %v978 = vunpack.c.l.s8.bf16 %v726
        %v979 = vunpack.c.l.s8.bf16 %v727
        %v980 = vunpack.c.h.s8.bf16 %v724
        %v981 = vunpack.c.h.s8.bf16 %v725
        %v982 = vunpack.c.h.s8.bf16 %v726
        %v983 = vunpack.c.h.s8.bf16 %v727
        %v984 = vunpack.c.l.s8.bf16 %v728
        %v985 = vunpack.c.l.s8.bf16 %v729
        %v986 = vunpack.c.l.s8.bf16 %v730
        %v987 = vunpack.c.l.s8.bf16 %v731
        %v988 = vunpack.c.h.s8.bf16 %v728
        %v989 = vunpack.c.h.s8.bf16 %v729
        %v990 = vunpack.c.h.s8.bf16 %v730
        %v991 = vunpack.c.h.s8.bf16 %v731
        %v992 = vunpack.c.l.s8.bf16 %v732
        %v993 = vunpack.c.l.s8.bf16 %v733
        %v994 = vunpack.c.l.s8.bf16 %v734
        %v995 = vunpack.c.l.s8.bf16 %v735
        %v996 = vunpack.c.h.s8.bf16 %v732
        %v997 = vunpack.c.h.s8.bf16 %v733
        %v998 = vunpack.c.h.s8.bf16 %v734
        %v999 = vunpack.c.h.s8.bf16 %v735
        %v1000 = vld [vmem:[%s253 + $0x8] sm:$0xf]
        %v1001 = vld [vmem:[%s253 + $0x14] sm:$0xf]
        %1002 = vmatprep.subr.bf16.mxu0 %v773
        %1003 = vmatpush1.bf16.msra.mxu0 %v772
        %1004 = vmatprep.subr.bf16.mxu0 %v769
        %1005 = vmatpush1.bf16.msra.mxu0 %v768
        %1006 = vmatprep.subr.bf16.mxu0 %v765
        %1007 = vmatpush1.bf16.msra.mxu0 %v764
        %1008 = vmatprep.subr.bf16.mxu0 %v761
        %1009 = vmatpush1.bf16.msra.mxu0 %v760
        %1010 = vmatprep.subr.bf16.mxu0 %v757
        %1011 = vmatpush1.bf16.msra.mxu0 %v756
        %1012 = vmatprep.subr.bf16.mxu0 %v753
        %1013 = vmatpush1.bf16.msra.mxu0 %v752
        %1014 = vmatprep.subr.bf16.mxu0 %v749
        %1015 = vmatpush1.bf16.msra.mxu0 %v748
        %1016 = vmatprep.subr.bf16.mxu0 %v745
        %1017 = vmatpush1.bf16.msra.mxu0 %v744
        %1018 = vmatprep.subr.bf16.mxu0 %v805
        %1019 = vmatpush2.bf16.msra.mxu0 %v804
        %1020 = vmatprep.subr.bf16.mxu0 %v801
        %1021 = vmatpush2.bf16.msra.mxu0 %v800
        %1022 = vmatprep.subr.bf16.mxu0 %v797
        %1023 = vmatpush2.bf16.msra.mxu0 %v796
        %1024 = vmatprep.subr.bf16.mxu0 %v793
        %1025 = vmatpush2.bf16.msra.mxu0 %v792
        %1026 = vmatprep.subr.bf16.mxu0 %v789
        %1027 = vmatpush2.bf16.msra.mxu0 %v788
        %1028 = vmatprep.subr.bf16.mxu0 %v785
        %1029 = vmatpush2.bf16.msra.mxu0 %v784
        %1030 = vmatprep.subr.bf16.mxu0 %v781
        %1031 = vmatpush2.bf16.msra.mxu0 %v780
        %1032 = vmatprep.subr.bf16.mxu0 %v777
        %1033 = vmatpush2.bf16.msra.mxu0 %v776
        %1034 = vmatprep.mubr.bf16.mxu0 %v737
        %1035 = vmatmul.mubr.bf16.gmra.mxu0 %v736
        %v1036 = vpop.f32.mrf.mxu0
        %v1037 = vadd.f32 0.0, %v1036
        %v1038 = vpop.f32.mrf.mxu0
        %v1039 = vadd.f32 0.0, %v1038
        %v1040 = vpop.f32.mrf.mxu0
        %v1041 = vpop.f32.mrf.mxu0
        %1042 = vdwg.mxu0
        %1043 = vmatprep.subr.bf16.mxu0 %v837
        %1044 = vmatpush1.bf16.msra.mxu0 %v836
        %1045 = vmatprep.subr.bf16.mxu0 %v833
        %1046 = vmatpush1.bf16.msra.mxu0 %v832
        %1047 = vmatprep.subr.bf16.mxu0 %v829
        %1048 = vmatpush1.bf16.msra.mxu0 %v828
        %1049 = vmatprep.subr.bf16.mxu0 %v825
        %1050 = vmatpush1.bf16.msra.mxu0 %v824
        %1051 = vmatprep.subr.bf16.mxu0 %v821
        %1052 = vmatpush1.bf16.msra.mxu0 %v820
        %1053 = vmatprep.subr.bf16.mxu0 %v817
        %1054 = vmatpush1.bf16.msra.mxu0 %v816
        %1055 = vmatprep.subr.bf16.mxu0 %v813
        %1056 = vmatpush1.bf16.msra.mxu0 %v812
        %1057 = vmatprep.subr.bf16.mxu0 %v809
        %1058 = vmatpush1.bf16.msra.mxu0 %v808
        %1059 = vmatprep.subr.bf16.mxu0 %v869
        %1060 = vmatpush2.bf16.msra.mxu0 %v868
        %1061 = vmatprep.subr.bf16.mxu0 %v865
        %1062 = vmatpush2.bf16.msra.mxu0 %v864
        %1063 = vmatprep.subr.bf16.mxu0 %v861
        %1064 = vmatpush2.bf16.msra.mxu0 %v860
        %1065 = vmatprep.subr.bf16.mxu0 %v857
        %1066 = vmatpush2.bf16.msra.mxu0 %v856
        %1067 = vmatprep.subr.bf16.mxu0 %v853
        %1068 = vmatpush2.bf16.msra.mxu0 %v852
        %1069 = vmatprep.subr.bf16.mxu0 %v849
        %1070 = vmatpush2.bf16.msra.mxu0 %v848
        %1071 = vmatprep.subr.bf16.mxu0 %v845
        %1072 = vmatpush2.bf16.msra.mxu0 %v844
        %1073 = vmatprep.subr.bf16.mxu0 %v841
        %1074 = vmatpush2.bf16.msra.mxu0 %v840
        %1075 = vmatprep.mubr.bf16.mxu0 %v739
        %1076 = vmatmul.mubr.bf16.gmra.mxu0 %v738
        %v1077 = vpop.f32.mrf.mxu0
        %v1078 = vadd.f32 %v1037, %v1077
        %v1079 = vpop.f32.mrf.mxu0
        %v1080 = vadd.f32 %v1039, %v1079
        %v1081 = vpop.f32.mrf.mxu0
        %v1082 = vpop.f32.mrf.mxu0
        %1083 = vdwg.mxu0
        %1084 = vmatprep.subr.bf16.mxu0 %v901
        %1085 = vmatpush1.bf16.msra.mxu0 %v900
        %1086 = vmatprep.subr.bf16.mxu0 %v897
        %1087 = vmatpush1.bf16.msra.mxu0 %v896
        %1088 = vmatprep.subr.bf16.mxu0 %v893
        %1089 = vmatpush1.bf16.msra.mxu0 %v892
        %1090 = vmatprep.subr.bf16.mxu0 %v889
        %1091 = vmatpush1.bf16.msra.mxu0 %v888
        %1092 = vmatprep.subr.bf16.mxu0 %v885
        %1093 = vmatpush1.bf16.msra.mxu0 %v884
        %1094 = vmatprep.subr.bf16.mxu0 %v881
        %1095 = vmatpush1.bf16.msra.mxu0 %v880
        %1096 = vmatprep.subr.bf16.mxu0 %v877
        %1097 = vmatpush1.bf16.msra.mxu0 %v876
        %1098 = vmatprep.subr.bf16.mxu0 %v873
        %1099 = vmatpush1.bf16.msra.mxu0 %v872
        %1100 = vmatprep.subr.bf16.mxu0 %v933
        %1101 = vmatpush2.bf16.msra.mxu0 %v932
        %1102 = vmatprep.subr.bf16.mxu0 %v929
        %1103 = vmatpush2.bf16.msra.mxu0 %v928
        %1104 = vmatprep.subr.bf16.mxu0 %v925
        %1105 = vmatpush2.bf16.msra.mxu0 %v924
        %1106 = vmatprep.subr.bf16.mxu0 %v921
        %1107 = vmatpush2.bf16.msra.mxu0 %v920
        %1108 = vmatprep.subr.bf16.mxu0 %v917
        %1109 = vmatpush2.bf16.msra.mxu0 %v916
        %1110 = vmatprep.subr.bf16.mxu0 %v913
        %1111 = vmatpush2.bf16.msra.mxu0 %v912
        %1112 = vmatprep.subr.bf16.mxu0 %v909
        %1113 = vmatpush2.bf16.msra.mxu0 %v908
        %1114 = vmatprep.subr.bf16.mxu0 %v905
        %1115 = vmatpush2.bf16.msra.mxu0 %v904
        %1116 = vmatprep.mubr.bf16.mxu0 %v741
        %1117 = vmatmul.mubr.bf16.gmra.mxu0 %v740
        %v1118 = vpop.f32.mrf.mxu0
        %v1119 = vadd.f32 %v1078, %v1118
        %v1120 = vpop.f32.mrf.mxu0
        %v1121 = vadd.f32 %v1080, %v1120
        %v1122 = vpop.f32.mrf.mxu0
        %v1123 = vpop.f32.mrf.mxu0
        %1124 = vdwg.mxu0
        %1125 = vmatprep.subr.bf16.mxu0 %v965
        %1126 = vmatpush1.bf16.msra.mxu0 %v964
        %1127 = vmatprep.subr.bf16.mxu0 %v961
        %1128 = vmatpush1.bf16.msra.mxu0 %v960
        %1129 = vmatprep.subr.bf16.mxu0 %v957
        %1130 = vmatpush1.bf16.msra.mxu0 %v956
        %1131 = vmatprep.subr.bf16.mxu0 %v953
        %1132 = vmatpush1.bf16.msra.mxu0 %v952
        %1133 = vmatprep.subr.bf16.mxu0 %v949
        %1134 = vmatpush1.bf16.msra.mxu0 %v948
        %1135 = vmatprep.subr.bf16.mxu0 %v945
        %1136 = vmatpush1.bf16.msra.mxu0 %v944
        %1137 = vmatprep.subr.bf16.mxu0 %v941
        %1138 = vmatpush1.bf16.msra.mxu0 %v940
        %1139 = vmatprep.subr.bf16.mxu0 %v937
        %1140 = vmatpush1.bf16.msra.mxu0 %v936
        %1141 = vmatprep.subr.bf16.mxu0 %v997
        %1142 = vmatpush2.bf16.msra.mxu0 %v996
        %1143 = vmatprep.subr.bf16.mxu0 %v993
        %1144 = vmatpush2.bf16.msra.mxu0 %v992
        %1145 = vmatprep.subr.bf16.mxu0 %v989
        %1146 = vmatpush2.bf16.msra.mxu0 %v988
        %1147 = vmatprep.subr.bf16.mxu0 %v985
        %1148 = vmatpush2.bf16.msra.mxu0 %v984
        %1149 = vmatprep.subr.bf16.mxu0 %v981
        %1150 = vmatpush2.bf16.msra.mxu0 %v980
        %1151 = vmatprep.subr.bf16.mxu0 %v977
        %1152 = vmatpush2.bf16.msra.mxu0 %v976
        %1153 = vmatprep.subr.bf16.mxu0 %v973
        %1154 = vmatpush2.bf16.msra.mxu0 %v972
        %1155 = vmatprep.subr.bf16.mxu0 %v969
        %1156 = vmatpush2.bf16.msra.mxu0 %v968
        %1157 = vmatprep.mubr.bf16.mxu0 %v743
        %1158 = vmatmul.mubr.bf16.gmra.mxu0 %v742
        %v1159 = vpop.f32.mrf.mxu0
        %v1160 = vadd.f32 %v1119, %v1159
        %v1161 = vpop.f32.mrf.mxu0
        %v1162 = vadd.f32 %v1121, %v1161
        %v1163 = vpop.f32.mrf.mxu0
        %v1164 = vpop.f32.mrf.mxu0
        %1165 = vdwg.mxu0
        %1166 = vmatprep.subr.bf16.mxu0 %v775
        %1167 = vmatpush1.bf16.msra.mxu0 %v774
        %1168 = vmatprep.subr.bf16.mxu0 %v771
        %1169 = vmatpush1.bf16.msra.mxu0 %v770
        %1170 = vmatprep.subr.bf16.mxu0 %v767
        %1171 = vmatpush1.bf16.msra.mxu0 %v766
        %1172 = vmatprep.subr.bf16.mxu0 %v763
        %1173 = vmatpush1.bf16.msra.mxu0 %v762
        %1174 = vmatprep.subr.bf16.mxu0 %v759
        %1175 = vmatpush1.bf16.msra.mxu0 %v758
        %1176 = vmatprep.subr.bf16.mxu0 %v755
        %1177 = vmatpush1.bf16.msra.mxu0 %v754
        %1178 = vmatprep.subr.bf16.mxu0 %v751
        %1179 = vmatpush1.bf16.msra.mxu0 %v750
        %1180 = vmatprep.subr.bf16.mxu0 %v747
        %1181 = vmatpush1.bf16.msra.mxu0 %v746
        %1182 = vmatprep.subr.bf16.mxu0 %v807
        %1183 = vmatpush2.bf16.msra.mxu0 %v806
        %1184 = vmatprep.subr.bf16.mxu0 %v803
        %1185 = vmatpush2.bf16.msra.mxu0 %v802
        %1186 = vmatprep.subr.bf16.mxu0 %v799
        %1187 = vmatpush2.bf16.msra.mxu0 %v798
        %1188 = vmatprep.subr.bf16.mxu0 %v795
        %1189 = vmatpush2.bf16.msra.mxu0 %v794
        %1190 = vmatprep.subr.bf16.mxu0 %v791
        %1191 = vmatpush2.bf16.msra.mxu0 %v790
        %1192 = vmatprep.subr.bf16.mxu0 %v787
        %1193 = vmatpush2.bf16.msra.mxu0 %v786
        %1194 = vmatprep.subr.bf16.mxu0 %v783
        %1195 = vmatpush2.bf16.msra.mxu0 %v782
        %1196 = vmatprep.subr.bf16.mxu0 %v779
        %1197 = vmatpush2.bf16.msra.mxu0 %v778
        %1198 = vmatprep.mubr.bf16.mxu0 %v737
        %1199 = vmatmul.mubr.bf16.gmra.mxu0 %v736
        %v1200 = vpop.f32.mrf.mxu0
        %v1201 = vadd.f32 0.0, %v1200
        %v1202 = vpop.f32.mrf.mxu0
        %v1203 = vadd.f32 0.0, %v1202
        %v1204 = vpop.f32.mrf.mxu0
        %v1205 = vpop.f32.mrf.mxu0
        %1206 = vdwg.mxu0
        %1207 = vmatprep.subr.bf16.mxu0 %v839
        %1208 = vmatpush1.bf16.msra.mxu0 %v838
        %1209 = vmatprep.subr.bf16.mxu0 %v835
        %1210 = vmatpush1.bf16.msra.mxu0 %v834
        %1211 = vmatprep.subr.bf16.mxu0 %v831
        %1212 = vmatpush1.bf16.msra.mxu0 %v830
        %1213 = vmatprep.subr.bf16.mxu0 %v827
        %1214 = vmatpush1.bf16.msra.mxu0 %v826
        %1215 = vmatprep.subr.bf16.mxu0 %v823
        %1216 = vmatpush1.bf16.msra.mxu0 %v822
        %1217 = vmatprep.subr.bf16.mxu0 %v819
        %1218 = vmatpush1.bf16.msra.mxu0 %v818
        %1219 = vmatprep.subr.bf16.mxu0 %v815
        %1220 = vmatpush1.bf16.msra.mxu0 %v814
        %1221 = vmatprep.subr.bf16.mxu0 %v811
        %1222 = vmatpush1.bf16.msra.mxu0 %v810
        %1223 = vmatprep.subr.bf16.mxu0 %v871
        %1224 = vmatpush2.bf16.msra.mxu0 %v870
        %1225 = vmatprep.subr.bf16.mxu0 %v867
        %1226 = vmatpush2.bf16.msra.mxu0 %v866
        %1227 = vmatprep.subr.bf16.mxu0 %v863
        %1228 = vmatpush2.bf16.msra.mxu0 %v862
        %1229 = vmatprep.subr.bf16.mxu0 %v859
        %1230 = vmatpush2.bf16.msra.mxu0 %v858
        %1231 = vmatprep.subr.bf16.mxu0 %v855
        %1232 = vmatpush2.bf16.msra.mxu0 %v854
        %1233 = vmatprep.subr.bf16.mxu0 %v851
        %1234 = vmatpush2.bf16.msra.mxu0 %v850
        %1235 = vmatprep.subr.bf16.mxu0 %v847
        %1236 = vmatpush2.bf16.msra.mxu0 %v846
        %1237 = vmatprep.subr.bf16.mxu0 %v843
        %1238 = vmatpush2.bf16.msra.mxu0 %v842
        %1239 = vmatprep.mubr.bf16.mxu0 %v739
        %1240 = vmatmul.mubr.bf16.gmra.mxu0 %v738
        %v1241 = vpop.f32.mrf.mxu0
        %v1242 = vadd.f32 %v1201, %v1241
        %v1243 = vpop.f32.mrf.mxu0
        %v1244 = vadd.f32 %v1203, %v1243
        %v1245 = vpop.f32.mrf.mxu0
        %v1246 = vpop.f32.mrf.mxu0
        %1247 = vdwg.mxu0
        %1248 = vmatprep.subr.bf16.mxu0 %v903
        %1249 = vmatpush1.bf16.msra.mxu0 %v902
        %1250 = vmatprep.subr.bf16.mxu0 %v899
        %1251 = vmatpush1.bf16.msra.mxu0 %v898
        %1252 = vmatprep.subr.bf16.mxu0 %v895
        %1253 = vmatpush1.bf16.msra.mxu0 %v894
        %1254 = vmatprep.subr.bf16.mxu0 %v891
        %1255 = vmatpush1.bf16.msra.mxu0 %v890
        %1256 = vmatprep.subr.bf16.mxu0 %v887
        %1257 = vmatpush1.bf16.msra.mxu0 %v886
        %1258 = vmatprep.subr.bf16.mxu0 %v883
        %1259 = vmatpush1.bf16.msra.mxu0 %v882
        %1260 = vmatprep.subr.bf16.mxu0 %v879
        %1261 = vmatpush1.bf16.msra.mxu0 %v878
        %1262 = vmatprep.subr.bf16.mxu0 %v875
        %1263 = vmatpush1.bf16.msra.mxu0 %v874
        %1264 = vmatprep.subr.bf16.mxu0 %v935
        %1265 = vmatpush2.bf16.msra.mxu0 %v934
        %1266 = vmatprep.subr.bf16.mxu0 %v931
        %1267 = vmatpush2.bf16.msra.mxu0 %v930
        %1268 = vmatprep.subr.bf16.mxu0 %v927
        %1269 = vmatpush2.bf16.msra.mxu0 %v926
        %1270 = vmatprep.subr.bf16.mxu0 %v923
        %1271 = vmatpush2.bf16.msra.mxu0 %v922
        %1272 = vmatprep.subr.bf16.mxu0 %v919
        %1273 = vmatpush2.bf16.msra.mxu0 %v918
        %1274 = vmatprep.subr.bf16.mxu0 %v915
        %1275 = vmatpush2.bf16.msra.mxu0 %v914
        %1276 = vmatprep.subr.bf16.mxu0 %v911
        %1277 = vmatpush2.bf16.msra.mxu0 %v910
        %1278 = vmatprep.subr.bf16.mxu0 %v907
        %1279 = vmatpush2.bf16.msra.mxu0 %v906
        %1280 = vmatprep.mubr.bf16.mxu0 %v741
        %1281 = vmatmul.mubr.bf16.gmra.mxu0 %v740
        %v1282 = vpop.f32.mrf.mxu0
        %v1283 = vadd.f32 %v1242, %v1282
        %v1284 = vpop.f32.mrf.mxu0
        %v1285 = vadd.f32 %v1244, %v1284
        %v1286 = vpop.f32.mrf.mxu0
        %v1287 = vpop.f32.mrf.mxu0
        %1288 = vdwg.mxu0
        %1289 = vmatprep.subr.bf16.mxu0 %v967
        %1290 = vmatpush1.bf16.msra.mxu0 %v966
        %1291 = vmatprep.subr.bf16.mxu0 %v963
        %1292 = vmatpush1.bf16.msra.mxu0 %v962
        %1293 = vmatprep.subr.bf16.mxu0 %v959
        %1294 = vmatpush1.bf16.msra.mxu0 %v958
        %1295 = vmatprep.subr.bf16.mxu0 %v955
        %1296 = vmatpush1.bf16.msra.mxu0 %v954
        %1297 = vmatprep.subr.bf16.mxu0 %v951
        %1298 = vmatpush1.bf16.msra.mxu0 %v950
        %1299 = vmatprep.subr.bf16.mxu0 %v947
        %1300 = vmatpush1.bf16.msra.mxu0 %v946
        %1301 = vmatprep.subr.bf16.mxu0 %v943
        %1302 = vmatpush1.bf16.msra.mxu0 %v942
        %1303 = vmatprep.subr.bf16.mxu0 %v939
        %1304 = vmatpush1.bf16.msra.mxu0 %v938
        %1305 = vmatprep.subr.bf16.mxu0 %v999
        %1306 = vmatpush2.bf16.msra.mxu0 %v998
        %1307 = vmatprep.subr.bf16.mxu0 %v995
        %1308 = vmatpush2.bf16.msra.mxu0 %v994
        %1309 = vmatprep.subr.bf16.mxu0 %v991
        %1310 = vmatpush2.bf16.msra.mxu0 %v990
        %1311 = vmatprep.subr.bf16.mxu0 %v987
        %1312 = vmatpush2.bf16.msra.mxu0 %v986
        %1313 = vmatprep.subr.bf16.mxu0 %v983
        %1314 = vmatpush2.bf16.msra.mxu0 %v982
        %1315 = vmatprep.subr.bf16.mxu0 %v979
        %1316 = vmatpush2.bf16.msra.mxu0 %v978
        %1317 = vmatprep.subr.bf16.mxu0 %v975
        %1318 = vmatpush2.bf16.msra.mxu0 %v974
        %1319 = vmatprep.subr.bf16.mxu0 %v971
        %1320 = vmatpush2.bf16.msra.mxu0 %v970
        %1321 = vmatprep.mubr.bf16.mxu0 %v743
        %1322 = vmatmul.mubr.bf16.gmra.mxu0 %v742
        %v1323 = vpop.f32.mrf.mxu0
        %v1324 = vadd.f32 %v1283, %v1323
        %v1325 = vpop.f32.mrf.mxu0
        %v1326 = vadd.f32 %v1285, %v1325
        %v1327 = vpop.f32.mrf.mxu0
        %v1328 = vpop.f32.mrf.mxu0
        %1329 = vdwg.mxu0
        %v1331 = vlaneseq
        %v1332 = vshrl.u32 %v1331, 7
        %v1333 = vsub.s32 0, %v1332
        %v1334 = vrot.slane %v1001, %v1333
        %v1335 = vlaneseq
        %v1336 = vshrl.u32 %v1335, 7
        %v1337 = vsub.s32 1, %v1336
        %v1338 = vrot.slane %v1001, %v1337
        %v1339 = vlaneseq
        %v1340 = vshrl.u32 %v1339, 7
        %v1341 = vsub.s32 2, %v1340
        %v1342 = vrot.slane %v1001, %v1341
        %v1343 = vlaneseq
        %v1344 = vshrl.u32 %v1343, 7
        %v1345 = vsub.s32 3, %v1344
        %v1346 = vrot.slane %v1001, %v1345
        %v1351 = vmul.f32 %v1160, %v1334
        %v1352 = vmul.f32 %v1162, %v1338
        %v1353 = vmul.f32 %v1324, %v1342
        %v1354 = vmul.f32 %v1326, %v1346
        %v1356 = vlaneseq
        %v1357 = vshrl.u32 %v1356, 7
        %v1358 = vsub.s32 0, %v1357
        %v1359 = vrot.slane %v1000, %v1358
        %v1360 = vlaneseq
        %v1361 = vshrl.u32 %v1360, 7
        %v1362 = vsub.s32 1, %v1361
        %v1363 = vrot.slane %v1000, %v1362
        %v1364 = vlaneseq
        %v1365 = vshrl.u32 %v1364, 7
        %v1366 = vsub.s32 2, %v1365
        %v1367 = vrot.slane %v1000, %v1366
        %v1368 = vlaneseq
        %v1369 = vshrl.u32 %v1368, 7
        %v1370 = vsub.s32 3, %v1369
        %v1371 = vrot.slane %v1000, %v1370
        %v1376 = vadd.f32 %v1351, %v1359
        %v1377 = vadd.f32 %v1352, %v1363
        %v1378 = vadd.f32 %v1353, %v1367
        %v1379 = vadd.f32 %v1354, %v1371
        %v1380 = vmax.f32 %v1376, 0.0
        %v1381 = vmax.f32 %v1377, 0.0
        %v1382 = vmax.f32 %v1378, 0.0
        %v1383 = vmax.f32 %v1379, 0.0
        %v1384 = vld [vmem:[%s244 + $0x400] sm:$0xff]
        %v1385 = vld [vmem:[%s244 + $0x408] sm:$0xff]
        %v1386 = vld [vmem:[%s244 + $0x410] sm:$0xff]
        %v1387 = vld [vmem:[%s244 + $0x418] sm:$0xff]
        %v1388 = vld [vmem:[%s244 + $0x420] sm:$0xff]
        %v1389 = vld [vmem:[%s244 + $0x428] sm:$0xff]
        %v1390 = vld [vmem:[%s244 + $0x430] sm:$0xff]
        %v1391 = vld [vmem:[%s244 + $0x438] sm:$0xff]
        %v1392 = vld [vmem:[%s244 + $0x440] sm:$0xff]
        %v1393 = vld [vmem:[%s244 + $0x448] sm:$0xff]
        %v1394 = vld [vmem:[%s244 + $0x450] sm:$0xff]
        %v1395 = vld [vmem:[%s244 + $0x458] sm:$0xff]
        %v1396 = vld [vmem:[%s244 + $0x460] sm:$0xff]
        %v1397 = vld [vmem:[%s244 + $0x468] sm:$0xff]
        %v1398 = vld [vmem:[%s244 + $0x470] sm:$0xff]
        %v1399 = vld [vmem:[%s244 + $0x478] sm:$0xff]
        %v1400 = vld [vmem:[%s244 + $0x480] sm:$0xff]
        %v1401 = vld [vmem:[%s244 + $0x488] sm:$0xff]
        %v1402 = vld [vmem:[%s244 + $0x490] sm:$0xff]
        %v1403 = vld [vmem:[%s244 + $0x498] sm:$0xff]
        %v1404 = vld [vmem:[%s244 + $0x4a0] sm:$0xff]
        %v1405 = vld [vmem:[%s244 + $0x4a8] sm:$0xff]
        %v1406 = vld [vmem:[%s244 + $0x4b0] sm:$0xff]
        %v1407 = vld [vmem:[%s244 + $0x4b8] sm:$0xff]
        %v1408 = vld [vmem:[%s244 + $0x4c0] sm:$0xff]
        %v1409 = vld [vmem:[%s244 + $0x4c8] sm:$0xff]
        %v1410 = vld [vmem:[%s244 + $0x4d0] sm:$0xff]
        %v1411 = vld [vmem:[%s244 + $0x4d8] sm:$0xff]
        %v1412 = vld [vmem:[%s244 + $0x4e0] sm:$0xff]
        %v1413 = vld [vmem:[%s244 + $0x4e8] sm:$0xff]
        %v1414 = vld [vmem:[%s244 + $0x4f0] sm:$0xff]
        %v1415 = vld [vmem:[%s244 + $0x4f8] sm:$0xff]
        %v1416 = vld [vmem:[%s244 + $0x500] sm:$0xff]
        %v1417 = vld [vmem:[%s244 + $0x508] sm:$0xff]
        %v1418 = vld [vmem:[%s244 + $0x510] sm:$0xff]
        %v1419 = vld [vmem:[%s244 + $0x518] sm:$0xff]
        %v1420 = vld [vmem:[%s244 + $0x520] sm:$0xff]
        %v1421 = vld [vmem:[%s244 + $0x528] sm:$0xff]
        %v1422 = vld [vmem:[%s244 + $0x530] sm:$0xff]
        %v1423 = vld [vmem:[%s244 + $0x538] sm:$0xff]
        %v1424 = vld [vmem:[%s244 + $0x540] sm:$0xff]
        %v1425 = vld [vmem:[%s244 + $0x548] sm:$0xff]
        %v1426 = vld [vmem:[%s244 + $0x550] sm:$0xff]
        %v1427 = vld [vmem:[%s244 + $0x558] sm:$0xff]
        %v1428 = vld [vmem:[%s244 + $0x560] sm:$0xff]
        %v1429 = vld [vmem:[%s244 + $0x568] sm:$0xff]
        %v1430 = vld [vmem:[%s244 + $0x570] sm:$0xff]
        %v1431 = vld [vmem:[%s244 + $0x578] sm:$0xff]
        %v1432 = vld [vmem:[%s244 + $0x580] sm:$0xff]
        %v1433 = vld [vmem:[%s244 + $0x588] sm:$0xff]
        %v1434 = vld [vmem:[%s244 + $0x590] sm:$0xff]
        %v1435 = vld [vmem:[%s244 + $0x598] sm:$0xff]
        %v1436 = vld [vmem:[%s244 + $0x5a0] sm:$0xff]
        %v1437 = vld [vmem:[%s244 + $0x5a8] sm:$0xff]
        %v1438 = vld [vmem:[%s244 + $0x5b0] sm:$0xff]
        %v1439 = vld [vmem:[%s244 + $0x5b8] sm:$0xff]
        %v1440 = vld [vmem:[%s244 + $0x5c0] sm:$0xff]
        %v1441 = vld [vmem:[%s244 + $0x5c8] sm:$0xff]
        %v1442 = vld [vmem:[%s244 + $0x5d0] sm:$0xff]
        %v1443 = vld [vmem:[%s244 + $0x5d8] sm:$0xff]
        %v1444 = vld [vmem:[%s244 + $0x5e0] sm:$0xff]
        %v1445 = vld [vmem:[%s244 + $0x5e8] sm:$0xff]
        %v1446 = vld [vmem:[%s244 + $0x5f0] sm:$0xff]
        %v1447 = vld [vmem:[%s244 + $0x5f8] sm:$0xff]
        %v1448 = vpack.c.bf16 %v1380, %v1380
        %v1449 = vpack.c.bf16 %v1381, %v1381
        %v1450 = vpack.c.bf16 %v1382, %v1382
        %v1451 = vpack.c.bf16 %v1383, %v1383
        %v1452 = vunpack.c.l.s8.bf16 %v1384
        %v1453 = vunpack.c.l.s8.bf16 %v1385
        %v1454 = vunpack.c.l.s8.bf16 %v1386
        %v1455 = vunpack.c.l.s8.bf16 %v1387
        %v1456 = vunpack.c.h.s8.bf16 %v1384
        %v1457 = vunpack.c.h.s8.bf16 %v1385
        %v1458 = vunpack.c.h.s8.bf16 %v1386
        %v1459 = vunpack.c.h.s8.bf16 %v1387
        %v1460 = vunpack.c.l.s8.bf16 %v1388
        %v1461 = vunpack.c.l.s8.bf16 %v1389
        %v1462 = vunpack.c.l.s8.bf16 %v1390
        %v1463 = vunpack.c.l.s8.bf16 %v1391
        %v1464 = vunpack.c.h.s8.bf16 %v1388
        %v1465 = vunpack.c.h.s8.bf16 %v1389
        %v1466 = vunpack.c.h.s8.bf16 %v1390
        %v1467 = vunpack.c.h.s8.bf16 %v1391
        %v1468 = vunpack.c.l.s8.bf16 %v1392
        %v1469 = vunpack.c.l.s8.bf16 %v1393
        %v1470 = vunpack.c.l.s8.bf16 %v1394
        %v1471 = vunpack.c.l.s8.bf16 %v1395
        %v1472 = vunpack.c.h.s8.bf16 %v1392
        %v1473 = vunpack.c.h.s8.bf16 %v1393
        %v1474 = vunpack.c.h.s8.bf16 %v1394
        %v1475 = vunpack.c.h.s8.bf16 %v1395
        %v1476 = vunpack.c.l.s8.bf16 %v1396
        %v1477 = vunpack.c.l.s8.bf16 %v1397
        %v1478 = vunpack.c.l.s8.bf16 %v1398
        %v1479 = vunpack.c.l.s8.bf16 %v1399
        %v1480 = vunpack.c.h.s8.bf16 %v1396
        %v1481 = vunpack.c.h.s8.bf16 %v1397
        %v1482 = vunpack.c.h.s8.bf16 %v1398
        %v1483 = vunpack.c.h.s8.bf16 %v1399
        %v1484 = vunpack.c.l.s8.bf16 %v1400
        %v1485 = vunpack.c.l.s8.bf16 %v1401
        %v1486 = vunpack.c.l.s8.bf16 %v1402
        %v1487 = vunpack.c.l.s8.bf16 %v1403
        %v1488 = vunpack.c.h.s8.bf16 %v1400
        %v1489 = vunpack.c.h.s8.bf16 %v1401
        %v1490 = vunpack.c.h.s8.bf16 %v1402
        %v1491 = vunpack.c.h.s8.bf16 %v1403
        %v1492 = vunpack.c.l.s8.bf16 %v1404
        %v1493 = vunpack.c.l.s8.bf16 %v1405
        %v1494 = vunpack.c.l.s8.bf16 %v1406
        %v1495 = vunpack.c.l.s8.bf16 %v1407
        %v1496 = vunpack.c.h.s8.bf16 %v1404
        %v1497 = vunpack.c.h.s8.bf16 %v1405
        %v1498 = vunpack.c.h.s8.bf16 %v1406
        %v1499 = vunpack.c.h.s8.bf16 %v1407
        %v1500 = vunpack.c.l.s8.bf16 %v1408
        %v1501 = vunpack.c.l.s8.bf16 %v1409
        %v1502 = vunpack.c.l.s8.bf16 %v1410
        %v1503 = vunpack.c.l.s8.bf16 %v1411
        %v1504 = vunpack.c.h.s8.bf16 %v1408
        %v1505 = vunpack.c.h.s8.bf16 %v1409
        %v1506 = vunpack.c.h.s8.bf16 %v1410
        %v1507 = vunpack.c.h.s8.bf16 %v1411
        %v1508 = vunpack.c.l.s8.bf16 %v1412
        %v1509 = vunpack.c.l.s8.bf16 %v1413
        %v1510 = vunpack.c.l.s8.bf16 %v1414
        %v1511 = vunpack.c.l.s8.bf16 %v1415
        %v1512 = vunpack.c.h.s8.bf16 %v1412
        %v1513 = vunpack.c.h.s8.bf16 %v1413
        %v1514 = vunpack.c.h.s8.bf16 %v1414
        %v1515 = vunpack.c.h.s8.bf16 %v1415
        %v1516 = vunpack.c.l.s8.bf16 %v1416
        %v1517 = vunpack.c.l.s8.bf16 %v1417
        %v1518 = vunpack.c.l.s8.bf16 %v1418
        %v1519 = vunpack.c.l.s8.bf16 %v1419
        %v1520 = vunpack.c.h.s8.bf16 %v1416
        %v1521 = vunpack.c.h.s8.bf16 %v1417
        %v1522 = vunpack.c.h.s8.bf16 %v1418
        %v1523 = vunpack.c.h.s8.bf16 %v1419
        %v1524 = vunpack.c.l.s8.bf16 %v1420
        %v1525 = vunpack.c.l.s8.bf16 %v1421
        %v1526 = vunpack.c.l.s8.bf16 %v1422
        %v1527 = vunpack.c.l.s8.bf16 %v1423
        %v1528 = vunpack.c.h.s8.bf16 %v1420
        %v1529 = vunpack.c.h.s8.bf16 %v1421
        %v1530 = vunpack.c.h.s8.bf16 %v1422
        %v1531 = vunpack.c.h.s8.bf16 %v1423
        %v1532 = vunpack.c.l.s8.bf16 %v1424
        %v1533 = vunpack.c.l.s8.bf16 %v1425
        %v1534 = vunpack.c.l.s8.bf16 %v1426
        %v1535 = vunpack.c.l.s8.bf16 %v1427
        %v1536 = vunpack.c.h.s8.bf16 %v1424
        %v1537 = vunpack.c.h.s8.bf16 %v1425
        %v1538 = vunpack.c.h.s8.bf16 %v1426
        %v1539 = vunpack.c.h.s8.bf16 %v1427
        %v1540 = vunpack.c.l.s8.bf16 %v1428
        %v1541 = vunpack.c.l.s8.bf16 %v1429
        %v1542 = vunpack.c.l.s8.bf16 %v1430
        %v1543 = vunpack.c.l.s8.bf16 %v1431
        %v1544 = vunpack.c.h.s8.bf16 %v1428
        %v1545 = vunpack.c.h.s8.bf16 %v1429
        %v1546 = vunpack.c.h.s8.bf16 %v1430
        %v1547 = vunpack.c.h.s8.bf16 %v1431
        %v1548 = vunpack.c.l.s8.bf16 %v1432
        %v1549 = vunpack.c.l.s8.bf16 %v1433
        %v1550 = vunpack.c.l.s8.bf16 %v1434
        %v1551 = vunpack.c.l.s8.bf16 %v1435
        %v1552 = vunpack.c.h.s8.bf16 %v1432
        %v1553 = vunpack.c.h.s8.bf16 %v1433
        %v1554 = vunpack.c.h.s8.bf16 %v1434
        %v1555 = vunpack.c.h.s8.bf16 %v1435
        %v1556 = vunpack.c.l.s8.bf16 %v1436
        %v1557 = vunpack.c.l.s8.bf16 %v1437
        %v1558 = vunpack.c.l.s8.bf16 %v1438
        %v1559 = vunpack.c.l.s8.bf16 %v1439
        %v1560 = vunpack.c.h.s8.bf16 %v1436
        %v1561 = vunpack.c.h.s8.bf16 %v1437
        %v1562 = vunpack.c.h.s8.bf16 %v1438
        %v1563 = vunpack.c.h.s8.bf16 %v1439
        %v1564 = vunpack.c.l.s8.bf16 %v1440
        %v1565 = vunpack.c.l.s8.bf16 %v1441
        %v1566 = vunpack.c.l.s8.bf16 %v1442
        %v1567 = vunpack.c.l.s8.bf16 %v1443
        %v1568 = vunpack.c.h.s8.bf16 %v1440
        %v1569 = vunpack.c.h.s8.bf16 %v1441
        %v1570 = vunpack.c.h.s8.bf16 %v1442
        %v1571 = vunpack.c.h.s8.bf16 %v1443
        %v1572 = vunpack.c.l.s8.bf16 %v1444
        %v1573 = vunpack.c.l.s8.bf16 %v1445
        %v1574 = vunpack.c.l.s8.bf16 %v1446
        %v1575 = vunpack.c.l.s8.bf16 %v1447
        %v1576 = vunpack.c.h.s8.bf16 %v1444
        %v1577 = vunpack.c.h.s8.bf16 %v1445
        %v1578 = vunpack.c.h.s8.bf16 %v1446
        %v1579 = vunpack.c.h.s8.bf16 %v1447
        %v1580 = vld [vmem:[%s253 + $0xc] sm:$0xf]
        %v1581 = vld [vmem:[%s253 + $0x18] sm:$0xf]
        %1582 = vmatprep.subr.bf16.mxu0 %v1481
        %1583 = vmatpush1.bf16.msra.mxu0 %v1480
        %1584 = vmatprep.subr.bf16.mxu0 %v1477
        %1585 = vmatpush1.bf16.msra.mxu0 %v1476
        %1586 = vmatprep.subr.bf16.mxu0 %v1473
        %1587 = vmatpush1.bf16.msra.mxu0 %v1472
        %1588 = vmatprep.subr.bf16.mxu0 %v1469
        %1589 = vmatpush1.bf16.msra.mxu0 %v1468
        %1590 = vmatprep.subr.bf16.mxu0 %v1465
        %1591 = vmatpush1.bf16.msra.mxu0 %v1464
        %1592 = vmatprep.subr.bf16.mxu0 %v1461
        %1593 = vmatpush1.bf16.msra.mxu0 %v1460
        %1594 = vmatprep.subr.bf16.mxu0 %v1457
        %1595 = vmatpush1.bf16.msra.mxu0 %v1456
        %1596 = vmatprep.subr.bf16.mxu0 %v1453
        %1597 = vmatpush1.bf16.msra.mxu0 %v1452
        %1598 = vmatprep.subr.bf16.mxu0 %v1513
        %1599 = vmatpush2.bf16.msra.mxu0 %v1512
        %1600 = vmatprep.subr.bf16.mxu0 %v1509
        %1601 = vmatpush2.bf16.msra.mxu0 %v1508
        %1602 = vmatprep.subr.bf16.mxu0 %v1505
        %1603 = vmatpush2.bf16.msra.mxu0 %v1504
        %1604 = vmatprep.subr.bf16.mxu0 %v1501
        %1605 = vmatpush2.bf16.msra.mxu0 %v1500
        %1606 = vmatprep.subr.bf16.mxu0 %v1497
        %1607 = vmatpush2.bf16.msra.mxu0 %v1496
        %1608 = vmatprep.subr.bf16.mxu0 %v1493
        %1609 = vmatpush2.bf16.msra.mxu0 %v1492
        %1610 = vmatprep.subr.bf16.mxu0 %v1489
        %1611 = vmatpush2.bf16.msra.mxu0 %v1488
        %1612 = vmatprep.subr.bf16.mxu0 %v1485
        %1613 = vmatpush2.bf16.msra.mxu0 %v1484
        %1614 = vmatprep.mubr.bf16.mxu0 %v1449
        %1615 = vmatmul.mubr.bf16.gmra.mxu0 %v1448
        %v1616 = vpop.f32.mrf.mxu0
        %v1617 = vadd.f32 0.0, %v1616
        %v1618 = vpop.f32.mrf.mxu0
        %v1619 = vadd.f32 0.0, %v1618
        %v1620 = vpop.f32.mrf.mxu0
        %v1621 = vpop.f32.mrf.mxu0
        %1622 = vdwg.mxu0
        %1623 = vmatprep.subr.bf16.mxu0 %v1545
        %1624 = vmatpush1.bf16.msra.mxu0 %v1544
        %1625 = vmatprep.subr.bf16.mxu0 %v1541
        %1626 = vmatpush1.bf16.msra.mxu0 %v1540
        %1627 = vmatprep.subr.bf16.mxu0 %v1537
        %1628 = vmatpush1.bf16.msra.mxu0 %v1536
        %1629 = vmatprep.subr.bf16.mxu0 %v1533
        %1630 = vmatpush1.bf16.msra.mxu0 %v1532
        %1631 = vmatprep.subr.bf16.mxu0 %v1529
        %1632 = vmatpush1.bf16.msra.mxu0 %v1528
        %1633 = vmatprep.subr.bf16.mxu0 %v1525
        %1634 = vmatpush1.bf16.msra.mxu0 %v1524
        %1635 = vmatprep.subr.bf16.mxu0 %v1521
        %1636 = vmatpush1.bf16.msra.mxu0 %v1520
        %1637 = vmatprep.subr.bf16.mxu0 %v1517
        %1638 = vmatpush1.bf16.msra.mxu0 %v1516
        %1639 = vmatprep.subr.bf16.mxu0 %v1577
        %1640 = vmatpush2.bf16.msra.mxu0 %v1576
        %1641 = vmatprep.subr.bf16.mxu0 %v1573
        %1642 = vmatpush2.bf16.msra.mxu0 %v1572
        %1643 = vmatprep.subr.bf16.mxu0 %v1569
        %1644 = vmatpush2.bf16.msra.mxu0 %v1568
        %1645 = vmatprep.subr.bf16.mxu0 %v1565
        %1646 = vmatpush2.bf16.msra.mxu0 %v1564
        %1647 = vmatprep.subr.bf16.mxu0 %v1561
        %1648 = vmatpush2.bf16.msra.mxu0 %v1560
        %1649 = vmatprep.subr.bf16.mxu0 %v1557
        %1650 = vmatpush2.bf16.msra.mxu0 %v1556
        %1651 = vmatprep.subr.bf16.mxu0 %v1553
        %1652 = vmatpush2.bf16.msra.mxu0 %v1552
        %1653 = vmatprep.subr.bf16.mxu0 %v1549
        %1654 = vmatpush2.bf16.msra.mxu0 %v1548
        %1655 = vmatprep.mubr.bf16.mxu0 %v1451
        %1656 = vmatmul.mubr.bf16.gmra.mxu0 %v1450
        %v1657 = vpop.f32.mrf.mxu0
        %v1658 = vadd.f32 %v1617, %v1657
        %v1659 = vpop.f32.mrf.mxu0
        %v1660 = vadd.f32 %v1619, %v1659
        %v1661 = vpop.f32.mrf.mxu0
        %v1662 = vpop.f32.mrf.mxu0
        %1663 = vdwg.mxu0
        %1664 = vmatprep.subr.bf16.mxu0 %v1483
        %1665 = vmatpush1.bf16.msra.mxu0 %v1482
        %1666 = vmatprep.subr.bf16.mxu0 %v1479
        %1667 = vmatpush1.bf16.msra.mxu0 %v1478
        %1668 = vmatprep.subr.bf16.mxu0 %v1475
        %1669 = vmatpush1.bf16.msra.mxu0 %v1474
        %1670 = vmatprep.subr.bf16.mxu0 %v1471
        %1671 = vmatpush1.bf16.msra.mxu0 %v1470
        %1672 = vmatprep.subr.bf16.mxu0 %v1467
        %1673 = vmatpush1.bf16.msra.mxu0 %v1466
        %1674 = vmatprep.subr.bf16.mxu0 %v1463
        %1675 = vmatpush1.bf16.msra.mxu0 %v1462
        %1676 = vmatprep.subr.bf16.mxu0 %v1459
        %1677 = vmatpush1.bf16.msra.mxu0 %v1458
        %1678 = vmatprep.subr.bf16.mxu0 %v1455
        %1679 = vmatpush1.bf16.msra.mxu0 %v1454
        %1680 = vmatprep.subr.bf16.mxu0 %v1515
        %1681 = vmatpush2.bf16.msra.mxu0 %v1514
        %1682 = vmatprep.subr.bf16.mxu0 %v1511
        %1683 = vmatpush2.bf16.msra.mxu0 %v1510
        %1684 = vmatprep.subr.bf16.mxu0 %v1507
        %1685 = vmatpush2.bf16.msra.mxu0 %v1506
        %1686 = vmatprep.subr.bf16.mxu0 %v1503
        %1687 = vmatpush2.bf16.msra.mxu0 %v1502
        %1688 = vmatprep.subr.bf16.mxu0 %v1499
        %1689 = vmatpush2.bf16.msra.mxu0 %v1498
        %1690 = vmatprep.subr.bf16.mxu0 %v1495
        %1691 = vmatpush2.bf16.msra.mxu0 %v1494
        %1692 = vmatprep.subr.bf16.mxu0 %v1491
        %1693 = vmatpush2.bf16.msra.mxu0 %v1490
        %1694 = vmatprep.subr.bf16.mxu0 %v1487
        %1695 = vmatpush2.bf16.msra.mxu0 %v1486
        %1696 = vmatprep.mubr.bf16.mxu0 %v1449
        %1697 = vmatmul.mubr.bf16.gmra.mxu0 %v1448
        %v1698 = vpop.f32.mrf.mxu0
        %v1699 = vadd.f32 0.0, %v1698
        %v1700 = vpop.f32.mrf.mxu0
        %v1701 = vadd.f32 0.0, %v1700
        %v1702 = vpop.f32.mrf.mxu0
        %v1703 = vpop.f32.mrf.mxu0
        %1704 = vdwg.mxu0
        %1705 = vmatprep.subr.bf16.mxu0 %v1547
        %1706 = vmatpush1.bf16.msra.mxu0 %v1546
        %1707 = vmatprep.subr.bf16.mxu0 %v1543
        %1708 = vmatpush1.bf16.msra.mxu0 %v1542
        %1709 = vmatprep.subr.bf16.mxu0 %v1539
        %1710 = vmatpush1.bf16.msra.mxu0 %v1538
        %1711 = vmatprep.subr.bf16.mxu0 %v1535
        %1712 = vmatpush1.bf16.msra.mxu0 %v1534
        %1713 = vmatprep.subr.bf16.mxu0 %v1531
        %1714 = vmatpush1.bf16.msra.mxu0 %v1530
        %1715 = vmatprep.subr.bf16.mxu0 %v1527
        %1716 = vmatpush1.bf16.msra.mxu0 %v1526
        %1717 = vmatprep.subr.bf16.mxu0 %v1523
        %1718 = vmatpush1.bf16.msra.mxu0 %v1522
        %1719 = vmatprep.subr.bf16.mxu0 %v1519
        %1720 = vmatpush1.bf16.msra.mxu0 %v1518
        %1721 = vmatprep.subr.bf16.mxu0 %v1579
        %1722 = vmatpush2.bf16.msra.mxu0 %v1578
        %1723 = vmatprep.subr.bf16.mxu0 %v1575
        %1724 = vmatpush2.bf16.msra.mxu0 %v1574
        %1725 = vmatprep.subr.bf16.mxu0 %v1571
        %1726 = vmatpush2.bf16.msra.mxu0 %v1570
        %1727 = vmatprep.subr.bf16.mxu0 %v1567
        %1728 = vmatpush2.bf16.msra.mxu0 %v1566
        %1729 = vmatprep.subr.bf16.mxu0 %v1563
        %1730 = vmatpush2.bf16.msra.mxu0 %v1562
        %1731 = vmatprep.subr.bf16.mxu0 %v1559
        %1732 = vmatpush2.bf16.msra.mxu0 %v1558
        %1733 = vmatprep.subr.bf16.mxu0 %v1555
        %1734 = vmatpush2.bf16.msra.mxu0 %v1554
        %1735 = vmatprep.subr.bf16.mxu0 %v1551
        %1736 = vmatpush2.bf16.msra.mxu0 %v1550
        %1737 = vmatprep.mubr.bf16.mxu0 %v1451
        %1738 = vmatmul.mubr.bf16.gmra.mxu0 %v1450
        %v1739 = vpop.f32.mrf.mxu0
        %v1740 = vadd.f32 %v1699, %v1739
        %v1741 = vpop.f32.mrf.mxu0
        %v1742 = vadd.f32 %v1701, %v1741
        %v1743 = vpop.f32.mrf.mxu0
        %v1744 = vpop.f32.mrf.mxu0
        %1745 = vdwg.mxu0
        %v1747 = vlaneseq
        %v1748 = vshrl.u32 %v1747, 7
        %v1749 = vsub.s32 0, %v1748
        %v1750 = vrot.slane %v1581, %v1749
        %v1751 = vlaneseq
        %v1752 = vshrl.u32 %v1751, 7
        %v1753 = vsub.s32 1, %v1752
        %v1754 = vrot.slane %v1581, %v1753
        %v1755 = vlaneseq
        %v1756 = vshrl.u32 %v1755, 7
        %v1757 = vsub.s32 2, %v1756
        %v1758 = vrot.slane %v1581, %v1757
        %v1759 = vlaneseq
        %v1760 = vshrl.u32 %v1759, 7
        %v1761 = vsub.s32 3, %v1760
        %v1762 = vrot.slane %v1581, %v1761
        %v1767 = vmul.f32 %v1658, %v1750
        %v1768 = vmul.f32 %v1660, %v1754
        %v1769 = vmul.f32 %v1740, %v1758
        %v1770 = vmul.f32 %v1742, %v1762
        %v1772 = vlaneseq
        %v1773 = vshrl.u32 %v1772, 7
        %v1774 = vsub.s32 0, %v1773
        %v1775 = vrot.slane %v1580, %v1774
        %v1776 = vlaneseq
        %v1777 = vshrl.u32 %v1776, 7
        %v1778 = vsub.s32 1, %v1777
        %v1779 = vrot.slane %v1580, %v1778
        %v1780 = vlaneseq
        %v1781 = vshrl.u32 %v1780, 7
        %v1782 = vsub.s32 2, %v1781
        %v1783 = vrot.slane %v1580, %v1782
        %v1784 = vlaneseq
        %v1785 = vshrl.u32 %v1784, 7
        %v1786 = vsub.s32 3, %v1785
        %v1787 = vrot.slane %v1580, %v1786
        %v1792 = vadd.f32 %v1767, %v1775
        %v1793 = vadd.f32 %v1768, %v1779
        %v1794 = vadd.f32 %v1769, %v1783
        %v1795 = vadd.f32 %v1770, %v1787
        %v1796 = vmax.f32 %v1792, 0.0
        %v1797 = vmax.f32 %v1793, 0.0
        %v1798 = vmax.f32 %v1794, 0.0
        %v1799 = vmax.f32 %v1795, 0.0
        %v1800 = vld [vmem:[%s244 + $0x600] sm:$0xff]
        %v1801 = vld [vmem:[%s244 + $0x608] sm:$0xff]
        %v1802 = vld [vmem:[%s244 + $0x610] sm:$0xff]
        %v1803 = vld [vmem:[%s244 + $0x618] sm:$0xff]
        %v1804 = vld [vmem:[%s244 + $0x620] sm:$0xff]
        %v1805 = vld [vmem:[%s244 + $0x628] sm:$0xff]
        %v1806 = vld [vmem:[%s244 + $0x630] sm:$0xff]
        %v1807 = vld [vmem:[%s244 + $0x638] sm:$0xff]
        %v1808 = vld [vmem:[%s244 + $0x640] sm:$0xff]
        %v1809 = vld [vmem:[%s244 + $0x648] sm:$0xff]
        %v1810 = vld [vmem:[%s244 + $0x650] sm:$0xff]
        %v1811 = vld [vmem:[%s244 + $0x658] sm:$0xff]
        %v1812 = vld [vmem:[%s244 + $0x660] sm:$0xff]
        %v1813 = vld [vmem:[%s244 + $0x668] sm:$0xff]
        %v1814 = vld [vmem:[%s244 + $0x670] sm:$0xff]
        %v1815 = vld [vmem:[%s244 + $0x678] sm:$0xff]
        %v1816 = vld [vmem:[%s244 + $0x680] sm:$0xff]
        %v1817 = vld [vmem:[%s244 + $0x688] sm:$0xff]
        %v1818 = vld [vmem:[%s244 + $0x690] sm:$0xff]
        %v1819 = vld [vmem:[%s244 + $0x698] sm:$0xff]
        %v1820 = vld [vmem:[%s244 + $0x6a0] sm:$0xff]
        %v1821 = vld [vmem:[%s244 + $0x6a8] sm:$0xff]
        %v1822 = vld [vmem:[%s244 + $0x6b0] sm:$0xff]
        %v1823 = vld [vmem:[%s244 + $0x6b8] sm:$0xff]
        %v1824 = vld [vmem:[%s244 + $0x6c0] sm:$0xff]
        %v1825 = vld [vmem:[%s244 + $0x6c8] sm:$0xff]
        %v1826 = vld [vmem:[%s244 + $0x6d0] sm:$0xff]
        %v1827 = vld [vmem:[%s244 + $0x6d8] sm:$0xff]
        %v1828 = vld [vmem:[%s244 + $0x6e0] sm:$0xff]
        %v1829 = vld [vmem:[%s244 + $0x6e8] sm:$0xff]
        %v1830 = vld [vmem:[%s244 + $0x6f0] sm:$0xff]
        %v1831 = vld [vmem:[%s244 + $0x6f8] sm:$0xff]
        %v1832 = vld [vmem:[%s244 + $0x700] sm:$0xff]
        %v1833 = vld [vmem:[%s244 + $0x708] sm:$0xff]
        %v1834 = vld [vmem:[%s244 + $0x710] sm:$0xff]
        %v1835 = vld [vmem:[%s244 + $0x718] sm:$0xff]
        %v1836 = vld [vmem:[%s244 + $0x720] sm:$0xff]
        %v1837 = vld [vmem:[%s244 + $0x728] sm:$0xff]
        %v1838 = vld [vmem:[%s244 + $0x730] sm:$0xff]
        %v1839 = vld [vmem:[%s244 + $0x738] sm:$0xff]
        %v1840 = vld [vmem:[%s244 + $0x740] sm:$0xff]
        %v1841 = vld [vmem:[%s244 + $0x748] sm:$0xff]
        %v1842 = vld [vmem:[%s244 + $0x750] sm:$0xff]
        %v1843 = vld [vmem:[%s244 + $0x758] sm:$0xff]
        %v1844 = vld [vmem:[%s244 + $0x760] sm:$0xff]
        %v1845 = vld [vmem:[%s244 + $0x768] sm:$0xff]
        %v1846 = vld [vmem:[%s244 + $0x770] sm:$0xff]
        %v1847 = vld [vmem:[%s244 + $0x778] sm:$0xff]
        %v1848 = vld [vmem:[%s244 + $0x780] sm:$0xff]
        %v1849 = vld [vmem:[%s244 + $0x788] sm:$0xff]
        %v1850 = vld [vmem:[%s244 + $0x790] sm:$0xff]
        %v1851 = vld [vmem:[%s244 + $0x798] sm:$0xff]
        %v1852 = vld [vmem:[%s244 + $0x7a0] sm:$0xff]
        %v1853 = vld [vmem:[%s244 + $0x7a8] sm:$0xff]
        %v1854 = vld [vmem:[%s244 + $0x7b0] sm:$0xff]
        %v1855 = vld [vmem:[%s244 + $0x7b8] sm:$0xff]
        %v1856 = vld [vmem:[%s244 + $0x7c0] sm:$0xff]
        %v1857 = vld [vmem:[%s244 + $0x7c8] sm:$0xff]
        %v1858 = vld [vmem:[%s244 + $0x7d0] sm:$0xff]
        %v1859 = vld [vmem:[%s244 + $0x7d8] sm:$0xff]
        %v1860 = vld [vmem:[%s244 + $0x7e0] sm:$0xff]
        %v1861 = vld [vmem:[%s244 + $0x7e8] sm:$0xff]
        %v1862 = vld [vmem:[%s244 + $0x7f0] sm:$0xff]
        %v1863 = vld [vmem:[%s244 + $0x7f8] sm:$0xff]
        %v1864 = vpack.c.bf16 %v1796, %v1796
        %v1865 = vpack.c.bf16 %v1797, %v1797
        %v1866 = vpack.c.bf16 %v1798, %v1798
        %v1867 = vpack.c.bf16 %v1799, %v1799
        %v1868 = vunpack.c.l.s8.bf16 %v1800
        %v1869 = vunpack.c.l.s8.bf16 %v1801
        %v1870 = vunpack.c.l.s8.bf16 %v1802
        %v1871 = vunpack.c.l.s8.bf16 %v1803
        %v1872 = vunpack.c.h.s8.bf16 %v1800
        %v1873 = vunpack.c.h.s8.bf16 %v1801
        %v1874 = vunpack.c.h.s8.bf16 %v1802
        %v1875 = vunpack.c.h.s8.bf16 %v1803
        %v1876 = vunpack.c.l.s8.bf16 %v1804
        %v1877 = vunpack.c.l.s8.bf16 %v1805
        %v1878 = vunpack.c.l.s8.bf16 %v1806
        %v1879 = vunpack.c.l.s8.bf16 %v1807
        %v1880 = vunpack.c.h.s8.bf16 %v1804
        %v1881 = vunpack.c.h.s8.bf16 %v1805
        %v1882 = vunpack.c.h.s8.bf16 %v1806
        %v1883 = vunpack.c.h.s8.bf16 %v1807
        %v1884 = vunpack.c.l.s8.bf16 %v1808
        %v1885 = vunpack.c.l.s8.bf16 %v1809
        %v1886 = vunpack.c.l.s8.bf16 %v1810
        %v1887 = vunpack.c.l.s8.bf16 %v1811
        %v1888 = vunpack.c.h.s8.bf16 %v1808
        %v1889 = vunpack.c.h.s8.bf16 %v1809
        %v1890 = vunpack.c.h.s8.bf16 %v1810
        %v1891 = vunpack.c.h.s8.bf16 %v1811
        %v1892 = vunpack.c.l.s8.bf16 %v1812
        %v1893 = vunpack.c.l.s8.bf16 %v1813
        %v1894 = vunpack.c.l.s8.bf16 %v1814
        %v1895 = vunpack.c.l.s8.bf16 %v1815
        %v1896 = vunpack.c.h.s8.bf16 %v1812
        %v1897 = vunpack.c.h.s8.bf16 %v1813
        %v1898 = vunpack.c.h.s8.bf16 %v1814
        %v1899 = vunpack.c.h.s8.bf16 %v1815
        %v1900 = vunpack.c.l.s8.bf16 %v1816
        %v1901 = vunpack.c.l.s8.bf16 %v1817
        %v1902 = vunpack.c.l.s8.bf16 %v1818
        %v1903 = vunpack.c.l.s8.bf16 %v1819
        %v1904 = vunpack.c.h.s8.bf16 %v1816
        %v1905 = vunpack.c.h.s8.bf16 %v1817
        %v1906 = vunpack.c.h.s8.bf16 %v1818
        %v1907 = vunpack.c.h.s8.bf16 %v1819
        %v1908 = vunpack.c.l.s8.bf16 %v1820
        %v1909 = vunpack.c.l.s8.bf16 %v1821
        %v1910 = vunpack.c.l.s8.bf16 %v1822
        %v1911 = vunpack.c.l.s8.bf16 %v1823
        %v1912 = vunpack.c.h.s8.bf16 %v1820
        %v1913 = vunpack.c.h.s8.bf16 %v1821
        %v1914 = vunpack.c.h.s8.bf16 %v1822
        %v1915 = vunpack.c.h.s8.bf16 %v1823
        %v1916 = vunpack.c.l.s8.bf16 %v1824
        %v1917 = vunpack.c.l.s8.bf16 %v1825
        %v1918 = vunpack.c.l.s8.bf16 %v1826
        %v1919 = vunpack.c.l.s8.bf16 %v1827
        %v1920 = vunpack.c.h.s8.bf16 %v1824
        %v1921 = vunpack.c.h.s8.bf16 %v1825
        %v1922 = vunpack.c.h.s8.bf16 %v1826
        %v1923 = vunpack.c.h.s8.bf16 %v1827
        %v1924 = vunpack.c.l.s8.bf16 %v1828
        %v1925 = vunpack.c.l.s8.bf16 %v1829
        %v1926 = vunpack.c.l.s8.bf16 %v1830
        %v1927 = vunpack.c.l.s8.bf16 %v1831
        %v1928 = vunpack.c.h.s8.bf16 %v1828
        %v1929 = vunpack.c.h.s8.bf16 %v1829
        %v1930 = vunpack.c.h.s8.bf16 %v1830
        %v1931 = vunpack.c.h.s8.bf16 %v1831
        %v1932 = vunpack.c.l.s8.bf16 %v1832
        %v1933 = vunpack.c.l.s8.bf16 %v1833
        %v1934 = vunpack.c.l.s8.bf16 %v1834
        %v1935 = vunpack.c.l.s8.bf16 %v1835
        %v1936 = vunpack.c.h.s8.bf16 %v1832
        %v1937 = vunpack.c.h.s8.bf16 %v1833
        %v1938 = vunpack.c.h.s8.bf16 %v1834
        %v1939 = vunpack.c.h.s8.bf16 %v1835
        %v1940 = vunpack.c.l.s8.bf16 %v1836
        %v1941 = vunpack.c.l.s8.bf16 %v1837
        %v1942 = vunpack.c.l.s8.bf16 %v1838
        %v1943 = vunpack.c.l.s8.bf16 %v1839
        %v1944 = vunpack.c.h.s8.bf16 %v1836
        %v1945 = vunpack.c.h.s8.bf16 %v1837
        %v1946 = vunpack.c.h.s8.bf16 %v1838
        %v1947 = vunpack.c.h.s8.bf16 %v1839
        %v1948 = vunpack.c.l.s8.bf16 %v1840
        %v1949 = vunpack.c.l.s8.bf16 %v1841
        %v1950 = vunpack.c.l.s8.bf16 %v1842
        %v1951 = vunpack.c.l.s8.bf16 %v1843
        %v1952 = vunpack.c.h.s8.bf16 %v1840
        %v1953 = vunpack.c.h.s8.bf16 %v1841
        %v1954 = vunpack.c.h.s8.bf16 %v1842
        %v1955 = vunpack.c.h.s8.bf16 %v1843
        %v1956 = vunpack.c.l.s8.bf16 %v1844
        %v1957 = vunpack.c.l.s8.bf16 %v1845
        %v1958 = vunpack.c.l.s8.bf16 %v1846
        %v1959 = vunpack.c.l.s8.bf16 %v1847
        %v1960 = vunpack.c.h.s8.bf16 %v1844
        %v1961 = vunpack.c.h.s8.bf16 %v1845
        %v1962 = vunpack.c.h.s8.bf16 %v1846
        %v1963 = vunpack.c.h.s8.bf16 %v1847
        %v1964 = vunpack.c.l.s8.bf16 %v1848
        %v1965 = vunpack.c.l.s8.bf16 %v1849
        %v1966 = vunpack.c.l.s8.bf16 %v1850
        %v1967 = vunpack.c.l.s8.bf16 %v1851
        %v1968 = vunpack.c.h.s8.bf16 %v1848
        %v1969 = vunpack.c.h.s8.bf16 %v1849
        %v1970 = vunpack.c.h.s8.bf16 %v1850
        %v1971 = vunpack.c.h.s8.bf16 %v1851
        %v1972 = vunpack.c.l.s8.bf16 %v1852
        %v1973 = vunpack.c.l.s8.bf16 %v1853
        %v1974 = vunpack.c.l.s8.bf16 %v1854
        %v1975 = vunpack.c.l.s8.bf16 %v1855
        %v1976 = vunpack.c.h.s8.bf16 %v1852
        %v1977 = vunpack.c.h.s8.bf16 %v1853
        %v1978 = vunpack.c.h.s8.bf16 %v1854
        %v1979 = vunpack.c.h.s8.bf16 %v1855
        %v1980 = vunpack.c.l.s8.bf16 %v1856
        %v1981 = vunpack.c.l.s8.bf16 %v1857
        %v1982 = vunpack.c.l.s8.bf16 %v1858
        %v1983 = vunpack.c.l.s8.bf16 %v1859
        %v1984 = vunpack.c.h.s8.bf16 %v1856
        %v1985 = vunpack.c.h.s8.bf16 %v1857
        %v1986 = vunpack.c.h.s8.bf16 %v1858
        %v1987 = vunpack.c.h.s8.bf16 %v1859
        %v1988 = vunpack.c.l.s8.bf16 %v1860
        %v1989 = vunpack.c.l.s8.bf16 %v1861
        %v1990 = vunpack.c.l.s8.bf16 %v1862
        %v1991 = vunpack.c.l.s8.bf16 %v1863
        %v1992 = vunpack.c.h.s8.bf16 %v1860
        %v1993 = vunpack.c.h.s8.bf16 %v1861
        %v1994 = vunpack.c.h.s8.bf16 %v1862
        %v1995 = vunpack.c.h.s8.bf16 %v1863
        %v1996 = vld [vmem:[%s253 + $0x10] sm:$0xf]
        %v1997 = vld [vmem:[%s253 + $0x1c] sm:$0xf]
        %1998 = vmatprep.subr.bf16.mxu0 %v1897
        %1999 = vmatpush1.bf16.msra.mxu0 %v1896
        %2000 = vmatprep.subr.bf16.mxu0 %v1893
        %2001 = vmatpush1.bf16.msra.mxu0 %v1892
        %2002 = vmatprep.subr.bf16.mxu0 %v1889
        %2003 = vmatpush1.bf16.msra.mxu0 %v1888
        %2004 = vmatprep.subr.bf16.mxu0 %v1885
        %2005 = vmatpush1.bf16.msra.mxu0 %v1884
        %2006 = vmatprep.subr.bf16.mxu0 %v1881
        %2007 = vmatpush1.bf16.msra.mxu0 %v1880
        %2008 = vmatprep.subr.bf16.mxu0 %v1877
        %2009 = vmatpush1.bf16.msra.mxu0 %v1876
        %2010 = vmatprep.subr.bf16.mxu0 %v1873
        %2011 = vmatpush1.bf16.msra.mxu0 %v1872
        %2012 = vmatprep.subr.bf16.mxu0 %v1869
        %2013 = vmatpush1.bf16.msra.mxu0 %v1868
        %2014 = vmatprep.subr.bf16.mxu0 %v1929
        %2015 = vmatpush2.bf16.msra.mxu0 %v1928
        %2016 = vmatprep.subr.bf16.mxu0 %v1925
        %2017 = vmatpush2.bf16.msra.mxu0 %v1924
        %2018 = vmatprep.subr.bf16.mxu0 %v1921
        %2019 = vmatpush2.bf16.msra.mxu0 %v1920
        %2020 = vmatprep.subr.bf16.mxu0 %v1917
        %2021 = vmatpush2.bf16.msra.mxu0 %v1916
        %2022 = vmatprep.subr.bf16.mxu0 %v1913
        %2023 = vmatpush2.bf16.msra.mxu0 %v1912
        %2024 = vmatprep.subr.bf16.mxu0 %v1909
        %2025 = vmatpush2.bf16.msra.mxu0 %v1908
        %2026 = vmatprep.subr.bf16.mxu0 %v1905
        %2027 = vmatpush2.bf16.msra.mxu0 %v1904
        %2028 = vmatprep.subr.bf16.mxu0 %v1901
        %2029 = vmatpush2.bf16.msra.mxu0 %v1900
        %2030 = vmatprep.mubr.bf16.mxu0 %v1865
        %2031 = vmatmul.mubr.bf16.gmra.mxu0 %v1864
        %v2032 = vpop.f32.mrf.mxu0
        %v2033 = vadd.f32 0.0, %v2032
        %v2034 = vpop.f32.mrf.mxu0
        %v2035 = vadd.f32 0.0, %v2034
        %v2036 = vpop.f32.mrf.mxu0
        %v2037 = vpop.f32.mrf.mxu0
        %2038 = vdwg.mxu0
        %2039 = vmatprep.subr.bf16.mxu0 %v1961
        %2040 = vmatpush1.bf16.msra.mxu0 %v1960
        %2041 = vmatprep.subr.bf16.mxu0 %v1957
        %2042 = vmatpush1.bf16.msra.mxu0 %v1956
        %2043 = vmatprep.subr.bf16.mxu0 %v1953
        %2044 = vmatpush1.bf16.msra.mxu0 %v1952
        %2045 = vmatprep.subr.bf16.mxu0 %v1949
        %2046 = vmatpush1.bf16.msra.mxu0 %v1948
        %2047 = vmatprep.subr.bf16.mxu0 %v1945
        %2048 = vmatpush1.bf16.msra.mxu0 %v1944
        %2049 = vmatprep.subr.bf16.mxu0 %v1941
        %2050 = vmatpush1.bf16.msra.mxu0 %v1940
        %2051 = vmatprep.subr.bf16.mxu0 %v1937
        %2052 = vmatpush1.bf16.msra.mxu0 %v1936
        %2053 = vmatprep.subr.bf16.mxu0 %v1933
        %2054 = vmatpush1.bf16.msra.mxu0 %v1932
        %2055 = vmatprep.subr.bf16.mxu0 %v1993
        %2056 = vmatpush2.bf16.msra.mxu0 %v1992
        %2057 = vmatprep.subr.bf16.mxu0 %v1989
        %2058 = vmatpush2.bf16.msra.mxu0 %v1988
        %2059 = vmatprep.subr.bf16.mxu0 %v1985
        %2060 = vmatpush2.bf16.msra.mxu0 %v1984
        %2061 = vmatprep.subr.bf16.mxu0 %v1981
        %2062 = vmatpush2.bf16.msra.mxu0 %v1980
        %2063 = vmatprep.subr.bf16.mxu0 %v1977
        %2064 = vmatpush2.bf16.msra.mxu0 %v1976
        %2065 = vmatprep.subr.bf16.mxu0 %v1973
        %2066 = vmatpush2.bf16.msra.mxu0 %v1972
        %2067 = vmatprep.subr.bf16.mxu0 %v1969
        %2068 = vmatpush2.bf16.msra.mxu0 %v1968
        %2069 = vmatprep.subr.bf16.mxu0 %v1965
        %2070 = vmatpush2.bf16.msra.mxu0 %v1964
        %2071 = vmatprep.mubr.bf16.mxu0 %v1867
        %2072 = vmatmul.mubr.bf16.gmra.mxu0 %v1866
        %v2073 = vpop.f32.mrf.mxu0
        %v2074 = vadd.f32 %v2033, %v2073
        %v2075 = vpop.f32.mrf.mxu0
        %v2076 = vadd.f32 %v2035, %v2075
        %v2077 = vpop.f32.mrf.mxu0
        %v2078 = vpop.f32.mrf.mxu0
        %2079 = vdwg.mxu0
        %2080 = vmatprep.subr.bf16.mxu0 %v1899
        %2081 = vmatpush1.bf16.msra.mxu0 %v1898
        %2082 = vmatprep.subr.bf16.mxu0 %v1895
        %2083 = vmatpush1.bf16.msra.mxu0 %v1894
        %2084 = vmatprep.subr.bf16.mxu0 %v1891
        %2085 = vmatpush1.bf16.msra.mxu0 %v1890
        %2086 = vmatprep.subr.bf16.mxu0 %v1887
        %2087 = vmatpush1.bf16.msra.mxu0 %v1886
        %2088 = vmatprep.subr.bf16.mxu0 %v1883
        %2089 = vmatpush1.bf16.msra.mxu0 %v1882
        %2090 = vmatprep.subr.bf16.mxu0 %v1879
        %2091 = vmatpush1.bf16.msra.mxu0 %v1878
        %2092 = vmatprep.subr.bf16.mxu0 %v1875
        %2093 = vmatpush1.bf16.msra.mxu0 %v1874
        %2094 = vmatprep.subr.bf16.mxu0 %v1871
        %2095 = vmatpush1.bf16.msra.mxu0 %v1870
        %2096 = vmatprep.subr.bf16.mxu0 %v1931
        %2097 = vmatpush2.bf16.msra.mxu0 %v1930
        %2098 = vmatprep.subr.bf16.mxu0 %v1927
        %2099 = vmatpush2.bf16.msra.mxu0 %v1926
        %2100 = vmatprep.subr.bf16.mxu0 %v1923
        %2101 = vmatpush2.bf16.msra.mxu0 %v1922
        %2102 = vmatprep.subr.bf16.mxu0 %v1919
        %2103 = vmatpush2.bf16.msra.mxu0 %v1918
        %2104 = vmatprep.subr.bf16.mxu0 %v1915
        %2105 = vmatpush2.bf16.msra.mxu0 %v1914
        %2106 = vmatprep.subr.bf16.mxu0 %v1911
        %2107 = vmatpush2.bf16.msra.mxu0 %v1910
        %2108 = vmatprep.subr.bf16.mxu0 %v1907
        %2109 = vmatpush2.bf16.msra.mxu0 %v1906
        %2110 = vmatprep.subr.bf16.mxu0 %v1903
        %2111 = vmatpush2.bf16.msra.mxu0 %v1902
        %2112 = vmatprep.mubr.bf16.mxu0 %v1865
        %2113 = vmatmul.mubr.bf16.gmra.mxu0 %v1864
        %v2114 = vpop.f32.mrf.mxu0
        %v2115 = vadd.f32 0.0, %v2114
        %v2116 = vpop.f32.mrf.mxu0
        %v2117 = vadd.f32 0.0, %v2116
        %v2118 = vpop.f32.mrf.mxu0
        %v2119 = vpop.f32.mrf.mxu0
        %2120 = vdwg.mxu0
        %2121 = vmatprep.subr.bf16.mxu0 %v1963
        %2122 = vmatpush1.bf16.msra.mxu0 %v1962
        %2123 = vmatprep.subr.bf16.mxu0 %v1959
        %2124 = vmatpush1.bf16.msra.mxu0 %v1958
        %2125 = vmatprep.subr.bf16.mxu0 %v1955
        %2126 = vmatpush1.bf16.msra.mxu0 %v1954
        %2127 = vmatprep.subr.bf16.mxu0 %v1951
        %2128 = vmatpush1.bf16.msra.mxu0 %v1950
        %2129 = vmatprep.subr.bf16.mxu0 %v1947
        %2130 = vmatpush1.bf16.msra.mxu0 %v1946
        %2131 = vmatprep.subr.bf16.mxu0 %v1943
        %2132 = vmatpush1.bf16.msra.mxu0 %v1942
        %2133 = vmatprep.subr.bf16.mxu0 %v1939
        %2134 = vmatpush1.bf16.msra.mxu0 %v1938
        %2135 = vmatprep.subr.bf16.mxu0 %v1935
        %2136 = vmatpush1.bf16.msra.mxu0 %v1934
        %2137 = vmatprep.subr.bf16.mxu0 %v1995
        %2138 = vmatpush2.bf16.msra.mxu0 %v1994
        %2139 = vmatprep.subr.bf16.mxu0 %v1991
        %2140 = vmatpush2.bf16.msra.mxu0 %v1990
        %2141 = vmatprep.subr.bf16.mxu0 %v1987
        %2142 = vmatpush2.bf16.msra.mxu0 %v1986
        %2143 = vmatprep.subr.bf16.mxu0 %v1983
        %2144 = vmatpush2.bf16.msra.mxu0 %v1982
        %2145 = vmatprep.subr.bf16.mxu0 %v1979
        %2146 = vmatpush2.bf16.msra.mxu0 %v1978
        %2147 = vmatprep.subr.bf16.mxu0 %v1975
        %2148 = vmatpush2.bf16.msra.mxu0 %v1974
        %2149 = vmatprep.subr.bf16.mxu0 %v1971
        %2150 = vmatpush2.bf16.msra.mxu0 %v1970
        %2151 = vmatprep.subr.bf16.mxu0 %v1967
        %2152 = vmatpush2.bf16.msra.mxu0 %v1966
        %2153 = vmatprep.mubr.bf16.mxu0 %v1867
        %2154 = vmatmul.mubr.bf16.gmra.mxu0 %v1866
        %v2155 = vpop.f32.mrf.mxu0
        %v2156 = vadd.f32 %v2115, %v2155
        %v2157 = vpop.f32.mrf.mxu0
        %v2158 = vadd.f32 %v2117, %v2157
        %v2159 = vpop.f32.mrf.mxu0
        %v2160 = vpop.f32.mrf.mxu0
        %2161 = vdwg.mxu0
        %v2163 = vlaneseq
        %v2164 = vshrl.u32 %v2163, 7
        %v2165 = vsub.s32 0, %v2164
        %v2166 = vrot.slane %v1997, %v2165
        %v2167 = vlaneseq
        %v2168 = vshrl.u32 %v2167, 7
        %v2169 = vsub.s32 1, %v2168
        %v2170 = vrot.slane %v1997, %v2169
        %v2171 = vlaneseq
        %v2172 = vshrl.u32 %v2171, 7
        %v2173 = vsub.s32 2, %v2172
        %v2174 = vrot.slane %v1997, %v2173
        %v2175 = vlaneseq
        %v2176 = vshrl.u32 %v2175, 7
        %v2177 = vsub.s32 3, %v2176
        %v2178 = vrot.slane %v1997, %v2177
        %v2183 = vmul.f32 %v2074, %v2166
        %v2184 = vmul.f32 %v2076, %v2170
        %v2185 = vmul.f32 %v2156, %v2174
        %v2186 = vmul.f32 %v2158, %v2178
        %v2188 = vlaneseq
        %v2189 = vshrl.u32 %v2188, 7
        %v2190 = vsub.s32 0, %v2189
        %v2191 = vrot.slane %v1996, %v2190
        %v2192 = vlaneseq
        %v2193 = vshrl.u32 %v2192, 7
        %v2194 = vsub.s32 1, %v2193
        %v2195 = vrot.slane %v1996, %v2194
        %v2196 = vlaneseq
        %v2197 = vshrl.u32 %v2196, 7
        %v2198 = vsub.s32 2, %v2197
        %v2199 = vrot.slane %v1996, %v2198
        %v2200 = vlaneseq
        %v2201 = vshrl.u32 %v2200, 7
        %v2202 = vsub.s32 3, %v2201
        %v2203 = vrot.slane %v1996, %v2202
        %v2208 = vadd.f32 %v2183, %v2191
        %v2209 = vadd.f32 %v2184, %v2195
        %v2210 = vadd.f32 %v2185, %v2199
        %v2211 = vadd.f32 %v2186, %v2203
        %v2212 = vmax.f32 %v2208, 0.0
        %v2213 = vmax.f32 %v2209, 0.0
        %v2214 = vmax.f32 %v2210, 0.0
        %v2215 = vmax.f32 %v2211, 0.0
        %v2216 = vld [vmem:[%s253 + $0x20] sm:$0xf]
        %v2218 = vlaneseq
        %v2219 = vshrl.u32 %v2218, 7
        %v2220 = vsub.s32 0, %v2219
        %v2221 = vrot.slane %v2216, %v2220
        %v2222 = vlaneseq
        %v2223 = vshrl.u32 %v2222, 7
        %v2224 = vsub.s32 1, %v2223
        %v2225 = vrot.slane %v2216, %v2224
        %v2226 = vlaneseq
        %v2227 = vshrl.u32 %v2226, 7
        %v2228 = vsub.s32 2, %v2227
        %v2229 = vrot.slane %v2216, %v2228
        %v2230 = vlaneseq
        %v2231 = vshrl.u32 %v2230, 7
        %v2232 = vsub.s32 3, %v2231
        %v2233 = vrot.slane %v2216, %v2232
        %v2238 = vmul.f32 %v2212, %v2221
        %v2239 = vmul.f32 %v2213, %v2225
        %v2240 = vmul.f32 %v2214, %v2229
        %v2241 = vmul.f32 %v2215, %v2233
        %v2242 = vadd.f32 %v2238, %v2239
        %v2243 = vadd.f32 %v2242, %v2240
        %v2244 = vadd.f32 %v2243, %v2241
        %2245 = vadd.xlane.f32.xlu0 %v2244
        %v2246 = vpop.xlane.xlu0 %2245
        %v2247 = vld [vmem:[%s253 + $0x24] sm:$0x1]
        %v2249 = vlaneseq
        %v2250 = vshrl.u32 %v2249, 7
        %v2251 = vsub.s32 0, %v2250
        %v2252 = vrot.slane %v2247, %v2251
        %v2254 = vadd.f32 %v2246, %v2252
        %v2255 = vmax.f32 %v2254, 0.0
        %vm2256 = vcmask 7168
        %2257 = vst.msk [vmem:[%s290] sm:$0xff] %vm2256, %v2255
        %p2258 = scmp.lt.s32.totalorder %s21, 1
        %s2259 = scalar_select %p2258, %s21, 1
        %s2260 = smul.addr %s2259, 8
        %s2261 = scalar_lea.vmem %s4, %s2260
        // Predicated region
        $region49: #{_lambda_.1} parent=35 // pred_check
          %p2262 = pneg %p138
        $region50: #{_lambda_.1} parent=35 // pred_check_branch
          %2264 = sbr.rel (%p2262) target = $region52
        $region51: #{_lambda_.1} parent=35 // pred_region
          _
        $region52: #{_lambda_.1} parent=35 // pred_fallthru
          _
      $region36: #{_lambda_.1} parent=5 // pred_fallthru
        _
      %p2265 = scmp.le.s32.totalorder 2, %s16
      // Predicated region
      $region53: #{_lambda_.1} parent=5 // pred_check
        %p2266 = pneg %p2265
      $region54: #{_lambda_.1} parent=5 // pred_check_branch
        %2268 = sbr.rel (%p2266) target = $region56
      $region55: #{_lambda_.1} parent=5 // pred_region
        %s2269 = ssub.s32 %s16, 2
        // Predicated region
        $region57: #{_lambda_.1} parent=55 // pred_check
          %p2270 = pneg %p144
        $region58: #{_lambda_.1} parent=55 // pred_check_branch
          %2272 = sbr.rel (%p2270) target = $region60
        $region59: #{_lambda_.1} parent=55 // pred_region
          %p2273 = scmp.lt.s32.totalorder %s22, 1
          %s2274 = scalar_select %p2273, %s22, 1
          %s2275 = smul.addr %s2274, 8
          %s2276 = scalar_lea.vmem %s4, %s2275
        $region60: #{_lambda_.1} parent=55 // pred_fallthru
          _
      $region56: #{_lambda_.1} parent=5 // pred_fallthru
        _
    $region6: #{_lambda_.1} parent=1 // loop_footer
      %s20 = sadd.s32 1, %s16
    $region7: #{_lambda_.1} parent=1 // loop_footer_branch
      %15 = sbr.rel target = $region3
    $region8: #{_lambda_.1} parent=1 // loop_exit
      _
    %2277 = vsyncpa [#allocation3], 1
    %s2278 = scalar_lea.sflag [#allocation3], 1
    %2279 = vsyncpa %s2278, 1
    %2280 = vsyncpa [#allocation5], 1
    %s2281 = scalar_lea.sflag [#allocation5], 1
    %2282 = vsyncpa %s2281, 1

</llo_original>
